<compile_context>
chip_gen: v6e
topology: v6e:2x2x1
jax: 0.10.0
libtpu: 0.0.40
codegen_flags: <defaults>
</compile_context>

<pallas_src>
import functools
import math

import jax
import jax.numpy as jnp
from jax.experimental import pallas as pl
from jax.experimental.pallas import tpu as pltpu


def _round_up(a, b):
    return (a + b - 1) // b * b


def _stats_kernel(x_ref, sum_ref, gram_ref):
    """Pass 1: accumulate per-column sum(x) and the Gram matrix G = x^T x."""
    @pl.when(pl.program_id(0) == 0)
    def _():
        sum_ref[...] = jnp.zeros_like(sum_ref)
        gram_ref[...] = jnp.zeros_like(gram_ref)

    x = x_ref[...]                                               # (tm, pc) bf16
    sum_ref[...] += jnp.sum(x.astype(jnp.float32), axis=0, keepdims=True)
    gram_ref[...] += jax.lax.dot_general(                        # x^T @ x
        x, x, dimension_numbers=(((0,), (0,)), ((), ())),
        preferred_element_type=jnp.float32)


def _conv_bn_act_kernel(x_ref, w_ref, b_ref, o_ref):
    """Pass 2: fused shuffle-folded 1x1 conv + BN shift + LeakyReLU(0.01)."""
    z = jnp.dot(x_ref[...], w_ref[...], preferred_element_type=jnp.float32)
    z = z + b_ref[...]
    o_ref[...] = jnp.where(z >= 0, z, jnp.float32(0.01) * z).astype(o_ref.dtype)


@functools.partial(
    jax.jit,
    static_argnames=("scale", "eps", "tm", "compute_dtype", "out_dtype", "out_layout"))
def pixel_shuffle_block(x_nchw, w_1x1, gamma, beta, *, scale=2, eps=1e-5,
                        tm=1024, compute_dtype=jnp.bfloat16,
                        out_dtype=jnp.float32, out_layout="NCHW"):
    """Forward of PixelShuffle(num_features): up(x) -> Conv2d(1x1) -> BN -> LeakyReLU.

    x_nchw : (N, C, H, W) with C = c_in * scale^2 (pre-shuffle, PyTorch NCHW).
    w_1x1  : (c_in, c_out) conv weight (torch (c_out, c_in, 1, 1) -> w[:, :, 0, 0].T).
    gamma, beta : (c_out,) BatchNorm2d affine parameters.
    out_layout : "NCHW" (PyTorch parity, costs one XLA transpose of the output)
                 or "NHWC" (fast path, no output transpose at all).
    """
    if out_layout not in ("NCHW", "NHWC"):
        raise ValueError("out_layout must be 'NCHW' or 'NHWC'")
    N, C, H, W = x_nchw.shape
    r = scale
    c_in = C // (r * r)
    c_out = w_1x1.shape[1]

    # ---- pixel-pack factor p: make pc and pq both multiples of 128 lanes ----
    def _pfac(a):
        return 128 // math.gcd(int(a), 128)
    p1, p2 = _pfac(c_in * r), _pfac(r * c_out)
    p = p1 * p2 // math.gcd(p1, p2)          # width-pixels packed per matrix row
    pc = p * c_in * r                        # kernel K dim (multiple of 128)
    pq = p * r * c_out                       # kernel N dim (multiple of 128)

    # ---- input boundary transform (one XLA pass over the small input) ----
    # NCHW with channel k = c*r^2 + i*r + j  ->  (n, h, i, w, c, j) so the kernel
    # output matrix is laid out (n, h, i, w, j, o) == NHWC up to free reshapes.
    # TODO(synk): if the surrounding model keeps this channels-last layout, this
    # transpose disappears entirely (boundary-only glue).
    x = x_nchw.astype(compute_dtype)
    x = x.reshape(N, c_in, r, r, H, W)                    # (n, c, i, j, h, w)
    x = jnp.transpose(x, (0, 4, 2, 5, 1, 3))              # (n, h, i, w, c, j)
    x = x.reshape(N * H * r, W, c_in * r)

    w_pad = _round_up(W, p)
    if w_pad != W:                                        # zero width-padding
        x = jnp.pad(x, ((0, 0), (0, w_pad - W), (0, 0)))
    m_rows = N * H * r * (w_pad // p)
    x_mat = x.reshape(m_rows, pc)

    # ---- tiling (tm rows per grid step) ----
    out_bytes = jnp.dtype(out_dtype).itemsize
    cd_bytes = jnp.dtype(compute_dtype).itemsize
    tm_eff = max(8, min(tm, _round_up(m_rows, 8)))
    if m_rows >= 16 and tm_eff >= m_rows:
        # ensure the "parallel" grid axis has >= 2 steps (both v7x TCs busy)
        tm_eff = _round_up((m_rows + 1) // 2, 8)

    def _footprint(t):  # double-buffered in/out streams + weight + bias
        return 2 * t * (pc * cd_bytes + pq * out_bytes) + 2 * pc * pq * cd_bytes + pq * 4
    while tm_eff > 8 and _footprint(tm_eff) > 24 * 1024 * 1024:
        tm_eff = max(8, _round_up(tm_eff // 2, 8))

    m_pad = _round_up(m_rows, tm_eff)
    if m_pad != m_rows:            # zero row-padding -> no in-kernel row mask needed
        x_mat = jnp.pad(x_mat, ((0, m_pad - m_rows), (0, 0)))
    num_tiles = m_pad // tm_eff

    cparams_acc = pltpu.CompilerParams(dimension_semantics=("arbitrary",),
                                       vmem_limit_bytes=32 * 1024 * 1024)
    cparams_par = pltpu.CompilerParams(dimension_semantics=("parallel",),
                                       vmem_limit_bytes=32 * 1024 * 1024)

    # ---- shuffle-expanded conv weight: (pc, pq), block-diagonal over (w_sub, j) ----
    w = w_1x1.astype(jnp.float32)                                         # (c_in, c_out)
    eye_r = jnp.eye(r, dtype=jnp.float32)
    wb = (w[:, None, None, :] * eye_r[None, :, :, None]).reshape(c_in * r, r * c_out)
    w2 = jnp.kron(jnp.eye(p, dtype=jnp.float32), wb)                      # (pc, pq)

    # ---- pass 1: x statistics (reads x once; sum + Gram accumulated in VMEM) ----
    sum_x, gram = pl.pallas_call(
        _stats_kernel,
        out_shape=(jax.ShapeDtypeStruct((1, pc), jnp.float32),
                   jax.ShapeDtypeStruct((pc, pc), jnp.float32)),
        grid=(num_tiles,),
        in_specs=[pl.BlockSpec((tm_eff, pc), lambda i: (i, 0))],
        out_specs=(pl.BlockSpec((1, pc), lambda i: (0, 0)),
                   pl.BlockSpec((pc, pc), lambda i: (0, 0))),
        compiler_params=cparams_acc,
    )(x_mat)

    # ---- BatchNorm2d training-mode batch statistics (biased, f32, tiny XLA math) ----
    count = jnp.float32(N * H * r * W * r)          # true count (padding excluded)
    sum_y = (sum_x @ w2).reshape(p * r, c_out)      # per-(w_sub, j) column sums of y
    ssq_y = jnp.sum(w2 * (gram @ w2), axis=0).reshape(p * r, c_out)   # diag(W^T G W)
    mean = jnp.sum(sum_y, axis=0) / count
    # NOTE: E[y^2] - mean^2; adequate here, a centered/Welford pass would be
    # safer when |mean| >> std on real activations.
    var = jnp.maximum(jnp.sum(ssq_y, axis=0) / count - mean * mean, 0.0)
    inv_std = jax.lax.rsqrt(var + jnp.float32(eps))
    bn_scale = gamma.astype(jnp.float32) * inv_std
    bn_shift = beta.astype(jnp.float32) - mean * bn_scale
    # TODO(synk): BatchNorm2d running_mean/running_var updates (module state) are
    # not emitted; only the forward normalization with batch stats is computed.

    # Fold BN scale into the weight and BN shift into a per-column bias.
    w2_scaled = (w2 * jnp.tile(bn_scale, p * r)[None, :]).astype(compute_dtype)
    shift_cols = jnp.tile(bn_shift, p * r)[None, :]                        # (1, pq) f32

    # ---- pass 2: fused conv + BN + LeakyReLU (re-reads x, lane-dense stores) ----
    y = pl.pallas_call(
        _conv_bn_act_kernel,
        out_shape=jax.ShapeDtypeStruct((m_pad, pq), out_dtype),
        grid=(num_tiles,),
        in_specs=[pl.BlockSpec((tm_eff, pc), lambda i: (i, 0)),
                  pl.BlockSpec((pc, pq), lambda i: (0, 0)),
                  pl.BlockSpec((1, pq), lambda i: (0, 0))],
        out_specs=pl.BlockSpec((tm_eff, pq), lambda i: (i, 0)),
        compiler_params=cparams_par,
    )(x_mat, w2_scaled, shift_cols)

    # ---- output: free reshape to NHWC; NCHW only when PyTorch parity is required ----
    if m_pad != m_rows:
        y = y[:m_rows]
    out_nhwc = y.reshape(N, H * r, w_pad * r, c_out)
    if w_pad != W:
        out_nhwc = out_nhwc[:, :, :W * r, :]
    if out_layout == "NHWC":
        return out_nhwc
    return jnp.transpose(out_nhwc, (0, 3, 1, 2))


def _reference(x_nchw, w_1x1, gamma, beta, *, scale=2, eps=1e-5):
    """Pure-JAX f32 reference for a correctness check."""
    N, C, H, W = x_nchw.shape
    r = scale
    c_in = C // (r * r)
    x = x_nchw.reshape(N, c_in, r, r, H, W).transpose(0, 1, 4, 2, 5, 3)
    x = x.reshape(N, c_in, H * r, W * r)
    y = jnp.einsum("nchw,co->nohw", x, w_1x1)
    mean = jnp.mean(y, axis=(0, 2, 3), keepdims=True)
    var = jnp.mean((y - mean) ** 2, axis=(0, 2, 3), keepdims=True)
    z = (y - mean) * jax.lax.rsqrt(var + eps)
    z = z * gamma[None, :, None, None] + beta[None, :, None, None]
    return jnp.where(z >= 0, z, 0.01 * z)


if __name__ == "__main__":
    num_features = 16          # input channels to the module (C = c_in * scale^2)
    scale = 2
    N, H, W = 2, 32, 32
    c_in = num_features // (scale * scale)   # channels after pixel shuffle
    c_out = num_features                     # Conv2d(num_features // 4, num_features, 1)

    key = jax.random.PRNGKey(0)
    kx, kw, kg, kb = jax.random.split(key, 4)
    x = jax.random.normal(kx, (N, num_features, H, W), dtype=jnp.float32)
    # Conv weight: torch shape (c_out, c_in, 1, 1) -> matrix (c_in, c_out), no bias.
    w_1x1 = jax.random.normal(kw, (c_in, c_out), dtype=jnp.float32) * (1.0 / math.sqrt(c_in))
    # Non-trivial BN affine parameters (fresh-module init would be gamma=1, beta=0).
    gamma = 1.0 + 0.1 * jax.random.normal(kg, (c_out,), dtype=jnp.float32)
    beta = 0.1 * jax.random.normal(kb, (c_out,), dtype=jnp.float32)

    ref = _reference(x, w_1x1, gamma, beta, scale=scale)

    # PyTorch-parity path: NCHW in, NCHW out, f32 output dtype.
    out = pixel_shuffle_block(x, w_1x1, gamma, beta, scale=scale)
    out = jax.block_until_ready(out)
    assert out.shape == (N, c_out, H * scale, W * scale)
    err = float(jnp.max(jnp.abs(out - ref)))
    assert jnp.allclose(out, ref, atol=3e-2, rtol=3e-2), err

    # Fast path: channels-last output (no output transpose at all) + bf16 stores.
    out_cl = pixel_shuffle_block(x, w_1x1, gamma, beta, scale=scale,
                                 out_layout="NHWC", out_dtype=jnp.bfloat16)
    out_cl = jax.block_until_ready(out_cl)
    assert out_cl.shape == (N, H * scale, W * scale, c_out)
    ref_cl = jnp.transpose(ref, (0, 2, 3, 1))
    err_cl = float(jnp.max(jnp.abs(out_cl.astype(jnp.float32) - ref_cl)))
    assert jnp.allclose(out_cl.astype(jnp.float32), ref_cl, atol=8e-2, rtol=8e-2), err_cl

    print("KERNEL_OK")
</pallas_src>

<mosaic_0001>
module attributes {stable_mosaic.version = 11 : i64} {
  func.func @_stats_kernel(%arg0: i32, %arg1: memref<128x128xbf16, #tpu.memory_space<vmem>>, %arg2: memref<1x128xf32, #tpu.memory_space<vmem>>, %arg3: memref<128x128xf32, #tpu.memory_space<vmem>>) attributes {dimension_semantics = [#tpu.dimension_semantics<arbitrary>], iteration_bounds = array<i64: 2>, scalar_prefetch = 0 : i64, scratch_operands = 0 : i64, tpu.core_type = #tpu.core_type<tc>, window_params = [{transform_indices = @transform_0, window_bounds = array<i64: 128, 128>}, {pipeline_mode = #tpu.pipeline_mode<synchronous>, transform_indices = @transform_1, window_bounds = array<i64: 1, 128>}, {pipeline_mode = #tpu.pipeline_mode<synchronous>, transform_indices = @transform_2, window_bounds = array<i64: 128, 128>}]} {
    %c0_i32 = arith.constant 0 : i32
    %0 = arith.cmpi eq, %arg0, %c0_i32 : i32
    %1 = arith.extui %0 : i1 to i32
    %c0_i32_0 = arith.constant 0 : i32
    %2 = arith.cmpi ne, %1, %c0_i32_0 : i32
    scf.if %2 {
      %cst_11 = arith.constant 0.000000e+00 : f32
      %14 = vector.broadcast %cst_11 : f32 to vector<1x128xf32>
      %c0_12 = arith.constant 0 : index
      %c0_13 = arith.constant 0 : index
      %15 = vector.load %arg2[%c0_12, %c0_13] : memref<1x128xf32, #tpu.memory_space<vmem>>, vector<1x128xf32>
      tpu.vector_store %arg2[%c0_12, %c0_13], %14 {strides = array<i32>} : memref<1x128xf32, #tpu.memory_space<vmem>>, vector<1x128xf32>,
      %cst_14 = arith.constant 0.000000e+00 : f32
      %16 = vector.broadcast %cst_14 : f32 to vector<128x128xf32>
      %c0_15 = arith.constant 0 : index
      %c0_16 = arith.constant 0 : index
      %17 = vector.load %arg3[%c0_15, %c0_16] : memref<128x128xf32, #tpu.memory_space<vmem>>, vector<128x128xf32>
      tpu.vector_store %arg3[%c0_15, %c0_16], %16 {strides = array<i32>} : memref<128x128xf32, #tpu.memory_space<vmem>>, vector<128x128xf32>,
    } else {
    }
    %c0 = arith.constant 0 : index
    %c0_1 = arith.constant 0 : index
    %3 = vector.load %arg1[%c0, %c0_1] : memref<128x128xbf16, #tpu.memory_space<vmem>>, vector<128x128xbf16>
    %c0_2 = arith.constant 0 : index
    %c0_3 = arith.constant 0 : index
    %4 = vector.load %arg2[%c0_2, %c0_3] : memref<1x128xf32, #tpu.memory_space<vmem>>, vector<1x128xf32>
    %5 = arith.extf %3 : vector<128x128xbf16> to vector<128x128xf32>
    %cst = arith.constant dense<0.000000e+00> : vector<128xf32>
    %6 = vector.multi_reduction <add>, %5, %cst [0] : vector<128x128xf32> to vector<128xf32>
    %7 = vector.shape_cast %6 : vector<128xf32> to vector<1x128xf32>
    %8 = arith.addf %4, %7 : vector<1x128xf32>
    %c0_4 = arith.constant 0 : index
    %c0_5 = arith.constant 0 : index
    %9 = vector.load %arg2[%c0_4, %c0_5] : memref<1x128xf32, #tpu.memory_space<vmem>>, vector<1x128xf32>
    tpu.vector_store %arg2[%c0_4, %c0_5], %8 {strides = array<i32>} : memref<1x128xf32, #tpu.memory_space<vmem>>, vector<1x128xf32>,
    %c0_6 = arith.constant 0 : index
    %c0_7 = arith.constant 0 : index
    %10 = vector.load %arg3[%c0_6, %c0_7] : memref<128x128xf32, #tpu.memory_space<vmem>>, vector<128x128xf32>
    %cst_8 = arith.constant dense<0.000000e+00> : vector<128x128xf32>
    %11 = tpu.matmul %3, %3, %cst_8 {dimension_numbers = #tpu.dot_dimension_numbers<[0], [0], [1], [1], [0, 1, 1, 1], [], []>} : vector<128x128xbf16>, vector<128x128xbf16>, vector<128x128xf32> -> vector<128x128xf32>
    %12 = arith.addf %10, %11 : vector<128x128xf32>
    %c0_9 = arith.constant 0 : index
    %c0_10 = arith.constant 0 : index
    %13 = vector.load %arg3[%c0_9, %c0_10] : memref<128x128xf32, #tpu.memory_space<vmem>>, vector<128x128xf32>
    tpu.vector_store %arg3[%c0_9, %c0_10], %12 {strides = array<i32>} : memref<128x128xf32, #tpu.memory_space<vmem>>, vector<128x128xf32>,
    return
  }
  func.func @transform_0(%arg0: i32) -> (i32, i32) {
    %c0_i32 = arith.constant 0 : i32
    %c0_i32_0 = arith.constant 0 : i32
    return %arg0, %c0_i32 : i32, i32
  }
  func.func @transform_1(%arg0: i32) -> (i32, i32) {
    %c0_i32 = arith.constant 0 : i32
    %c0_i32_0 = arith.constant 0 : i32
    %c0_i32_1 = arith.constant 0 : i32
    return %c0_i32, %c0_i32_0 : i32, i32
  }
  func.func @transform_2(%arg0: i32) -> (i32, i32) {
    %c0_i32 = arith.constant 0 : i32
    %c0_i32_0 = arith.constant 0 : i32
    %c0_i32_1 = arith.constant 0 : i32
    return %c0_i32, %c0_i32_0 : i32, i32
  }
}

module attributes {stable_mosaic.version = 11 : i64} {
  func.func @_conv_bn_act_kernel(%arg0: i32, %arg1: memref<128x128xbf16, #tpu.memory_space<vmem>>, %arg2: memref<128x512xbf16, #tpu.memory_space<vmem>>, %arg3: memref<1x512xf32, #tpu.memory_space<vmem>>, %arg4: memref<128x512xf32, #tpu.memory_space<vmem>>) attributes {dimension_semantics = [#tpu.dimension_semantics<parallel>], iteration_bounds = array<i64: 2>, scalar_prefetch = 0 : i64, scratch_operands = 0 : i64, tpu.core_type = #tpu.core_type<tc>, window_params = [{transform_indices = @transform_0, window_bounds = array<i64: 128, 128>}, {pipeline_mode = #tpu.pipeline_mode<synchronous>, transform_indices = @transform_1, window_bounds = array<i64: 128, 512>}, {pipeline_mode = #tpu.pipeline_mode<synchronous>, transform_indices = @transform_2, window_bounds = array<i64: 1, 512>}, {transform_indices = @transform_3, window_bounds = array<i64: 128, 512>}]} {
    %c0 = arith.constant 0 : index
    %c0_0 = arith.constant 0 : index
    %0 = vector.load %arg1[%c0, %c0_0] : memref<128x128xbf16, #tpu.memory_space<vmem>>, vector<128x128xbf16>
    %c0_1 = arith.constant 0 : index
    %c0_2 = arith.constant 0 : index
    %1 = vector.load %arg2[%c0_1, %c0_2] : memref<128x512xbf16, #tpu.memory_space<vmem>>, vector<128x512xbf16>
    %cst = arith.constant dense<0.000000e+00> : vector<128x512xf32>
    %2 = tpu.matmul %0, %1, %cst {dimension_numbers = #tpu.dot_dimension_numbers<[1], [0], [0], [1], [0, 0, 1, 1], [], []>} : vector<128x128xbf16>, vector<128x512xbf16>, vector<128x512xf32> -> vector<128x512xf32>
    %c0_3 = arith.constant 0 : index
    %c0_4 = arith.constant 0 : index
    %3 = vector.load %arg3[%c0_3, %c0_4] : memref<1x512xf32, #tpu.memory_space<vmem>>, vector<1x512xf32>
    %4 = vector.broadcast %3 : vector<1x512xf32> to vector<128x512xf32>
    %5 = arith.addf %2, %4 : vector<128x512xf32>
    %cst_5 = arith.constant 0.000000e+00 : f32
    %6 = vector.broadcast %cst_5 : f32 to vector<128x512xf32>
    %7 = arith.cmpf oge, %5, %6 : vector<128x512xf32>
    %cst_6 = arith.constant 0.00999999977 : f32
    %8 = vector.broadcast %cst_6 : f32 to vector<128x512xf32>
    %9 = arith.mulf %8, %5 : vector<128x512xf32>
    %10 = arith.select %7, %5, %9 : vector<128x512xi1>, vector<128x512xf32>
    %c0_7 = arith.constant 0 : index
    %c0_8 = arith.constant 0 : index
    %11 = vector.load %arg4[%c0_7, %c0_8] : memref<128x512xf32, #tpu.memory_space<vmem>>, vector<128x512xf32>
    tpu.vector_store %arg4[%c0_7, %c0_8], %10 {strides = array<i32>} : memref<128x512xf32, #tpu.memory_space<vmem>>, vector<128x512xf32>,
    return
  }
  func.func @transform_0(%arg0: i32) -> (i32, i32) {
    %c0_i32 = arith.constant 0 : i32
    %c0_i32_0 = arith.constant 0 : i32
    return %arg0, %c0_i32 : i32, i32
  }
  func.func @transform_1(%arg0: i32) -> (i32, i32) {
    %c0_i32 = arith.constant 0 : i32
    %c0_i32_0 = arith.constant 0 : i32
    %c0_i32_1 = arith.constant 0 : i32
    return %c0_i32, %c0_i32_0 : i32, i32
  }
  func.func @transform_2(%arg0: i32) -> (i32, i32) {
    %c0_i32 = arith.constant 0 : i32
    %c0_i32_0 = arith.constant 0 : i32
    %c0_i32_1 = arith.constant 0 : i32
    return %c0_i32, %c0_i32_0 : i32, i32
  }
  func.func @transform_3(%arg0: i32) -> (i32, i32) {
    %c0_i32 = arith.constant 0 : i32
    %c0_i32_0 = arith.constant 0 : i32
    return %arg0, %c0_i32 : i32, i32
  }
}

</mosaic_0001>

<llo_original>
// kernel: pixel_shuffle_block.2
$region0: #{pixel_shuffle_block.2}
  #allocation0 [shape = 'u32[]', space=smem, size = 0x4, offset = 0x4, fixed_abs, tag = 'smem constant byte address 0x4 - core index']
  #allocation1 [shape = 'u32[144,128]{1,0:T(1,128)}', space=vmem, size = 0x12000, scoped, tag = 'internal scratch']
  %s0 = inlined_call_operand.vmem [shape: bf16[256,128], index: 0, kind: input, shape index: {}]
  %s1 = inlined_call_operand.vmem [shape: f32[1,128], index: 1, kind: output, shape index: {0}]
  %s2 = inlined_call_operand.vmem [shape: f32[128,128], index: 2, kind: output, shape index: {1}]
  %3 = xla_tuple %s1, %s2
  %s4 = sld [smem:[#allocation0]]
  $region49: #{pixel_shuffle_block.2} parent=0
    _
  %s6 = ssub.s32 1, %s4
  %s7 = scalar_select 0, %s6, %s4
  loop: start=0, step=1, limit=4
  $region2: #{pixel_shuffle_block.2} parent=0 // loop_pre_header
    _
  $region3: #{pixel_shuffle_block.2} parent=0 // loop_header
    %s9 = sphi 0, %s13
    %p10 = scmp.ge.s32.totalorder %s9, 4
    %s19 = sphi 0, %s21
    %s22 = sphi 0, %s19
    %s23 = sphi 0, %s22
    %s39 = sphi 0, %s23
    %s43 = sphi 0, %s43
    %s45 = sphi 0, %s43
    %s46 = sphi 0, %s45
    %s60 = sphi 0, %s46
    %s64 = sphi 0, %s64
    %s66 = sphi 0, %s64
    %s67 = sphi 0, %s66
    %s81 = sphi 0, %s67
  $region4: #{pixel_shuffle_block.2} parent=0 // loop_header_branch
    %12 = sbr.rel (%p10) target = $region8
  $region5: #{pixel_shuffle_block.2} parent=0 // loop_body
    %s14 = ssub.s32 %s9, 1
    %s15 = ssub.s32 %s9, 2
    %s16 = sadd.s32 %s9, 1
    %s17 = ssub.s32 %s9, %s16
    %p18 = scmp.eq.s32.totalorder %s17, 0
    %s20 = sadd.s32 %s19, 1
    %s21 = scalar_select %p18, %s19, %s20
    %p24 = pneg %p18
    %p25 = scmp.eq.s32.totalorder %s9, 1
    %p26 = por %p24, %p25
    %p27 = scmp.ne.s32.totalorder %s19, %s22
    %p28 = scmp.eq.s32.totalorder %s9, 0
    %p29 = por %p27, %p28
    %p30 = scmp.ne.s32.totalorder %s19, %s22
    %p31 = scmp.eq.s32.totalorder %s14, 1
    %p32 = por %p30, %p31
    %p33 = scmp.ne.s32.totalorder %s22, %s23
    %p34 = scmp.eq.s32.totalorder %s14, 0
    %p35 = por %p33, %p34
    %p36 = scmp.ne.s32.totalorder %s22, %s23
    %p37 = scmp.eq.s32.totalorder %s15, 1
    %p38 = por %p36, %p37
    %p40 = scmp.ne.s32.totalorder %s23, %s39
    %p41 = scmp.eq.s32.totalorder %s15, 0
    %p42 = por %p40, %p41
    %s44 = sadd.s32 %s43, 1
    %p47 = scmp.eq.s32.totalorder %s9, 1
    %p48 = scmp.ne.s32.totalorder %s43, %s45
    %p49 = scmp.eq.s32.totalorder %s9, 0
    %p50 = por %p48, %p49
    %p51 = scmp.ne.s32.totalorder %s43, %s45
    %p52 = scmp.eq.s32.totalorder %s14, 1
    %p53 = por %p51, %p52
    %p54 = scmp.ne.s32.totalorder %s45, %s46
    %p55 = scmp.eq.s32.totalorder %s14, 0
    %p56 = por %p54, %p55
    %p57 = scmp.ne.s32.totalorder %s45, %s46
    %p58 = scmp.eq.s32.totalorder %s15, 1
    %p59 = por %p57, %p58
    %p61 = scmp.ne.s32.totalorder %s46, %s60
    %p62 = scmp.eq.s32.totalorder %s15, 0
    %p63 = por %p61, %p62
    %s65 = sadd.s32 %s64, 1
    %p68 = scmp.eq.s32.totalorder %s9, 1
    %p69 = scmp.ne.s32.totalorder %s64, %s66
    %p70 = scmp.eq.s32.totalorder %s9, 0
    %p71 = por %p69, %p70
    %p72 = scmp.ne.s32.totalorder %s64, %s66
    %p73 = scmp.eq.s32.totalorder %s14, 1
    %p74 = por %p72, %p73
    %p75 = scmp.ne.s32.totalorder %s66, %s67
    %p76 = scmp.eq.s32.totalorder %s14, 0
    %p77 = por %p75, %p76
    %p78 = scmp.ne.s32.totalorder %s66, %s67
    %p79 = scmp.eq.s32.totalorder %s15, 1
    %p80 = por %p78, %p79
    %p82 = scmp.ne.s32.totalorder %s67, %s81
    %p83 = scmp.eq.s32.totalorder %s15, 0
    %p84 = por %p82, %p83
    %p85 = scmp.le.s32.totalorder 1, %s9
    %p86 = scmp.lt.s32.totalorder %s9, 3
    %p87 = pnand %p85, %p86
    %p88 = pneg %p87
    // Predicated region
    $region9: #{pixel_shuffle_block.2} parent=5 // pred_check
      _
    $region10: #{pixel_shuffle_block.2} parent=5 // pred_check_branch
      %90 = sbr.rel (%p87) target = $region12
    $region11: #{pixel_shuffle_block.2} parent=5 // pred_region
      %s91 = ssub.s32 %s9, 1
    $region12: #{pixel_shuffle_block.2} parent=5 // pred_fallthru
      _
    %p92 = scmp.lt.s32.totalorder %s9, 2
    // Predicated region
    $region13: #{pixel_shuffle_block.2} parent=5 // pred_check
      %p93 = pneg %p92
    $region14: #{pixel_shuffle_block.2} parent=5 // pred_check_branch
      %95 = sbr.rel (%p93) target = $region16
    $region15: #{pixel_shuffle_block.2} parent=5 // pred_region
      // Predicated region
      $region17: #{pixel_shuffle_block.2} parent=15 // pred_check
        %p96 = pneg %p29
      $region18: #{pixel_shuffle_block.2} parent=15 // pred_check_branch
        %98 = sbr.rel (%p96) target = $region20
      $region19: #{pixel_shuffle_block.2} parent=15 // pred_region
        %s99 = smul.u32 16, %s9
        %p100 = scmp.lt.s32.totalorder %s99, 31
        %s101 = scalar_select %p100, %s99, 31
        %s102 = smul.addr %s101, 4
        %s103 = scalar_lea.vmem %s0, %s102
        %s104 = smul.u32 16, %s9
      $region20: #{pixel_shuffle_block.2} parent=15 // pred_fallthru
        _
    $region16: #{pixel_shuffle_block.2} parent=5 // pred_fallthru
      _
    %p105 = scmp.le.s32.totalorder 1, %s9
    %p106 = scmp.lt.s32.totalorder %s9, 3
    %p107 = pnand %p105, %p106
    %p108 = pneg %p107
    // Predicated region
    $region21: #{pixel_shuffle_block.2} parent=5 // pred_check
      _
    $region22: #{pixel_shuffle_block.2} parent=5 // pred_check_branch
      %110 = sbr.rel (%p107) target = $region24
    $region23: #{pixel_shuffle_block.2} parent=5 // pred_region
      %s111 = ssub.s32 %s9, 1
      %s112 = smul.u32 16, %s14
      %p113 = scmp.lt.s32.totalorder %s112, 31
      %s114 = scalar_select %p113, %s112, 31
      %s115 = smul.addr %s114, 4
      %s116 = scalar_lea.vmem %s0, %s115
      %p117 = pneg %p35
      %p118 = pneg %p32
      %p119 = pneg %p56
      %p120 = pneg %p53
      %p121 = pneg %p77
      %p122 = pneg %p74
      %s123 = smul.u32 16, %s14
      %p124 = scmp.lt.s32.totalorder %s123, 31
      %s125 = scalar_select %p124, %s123, 31
      %s126 = smul.addr %s125, 4
      %s127 = scalar_lea.vmem %s0, %s126
      %s128 = smul.u32 16, %s14
      %p130 = scmp.eq.s32.totalorder %s14, 0
      // Predicated region
      $region25: #{pixel_shuffle_block.2} parent=23 // pred_check
        %p131 = pneg %p130
      $region26: #{pixel_shuffle_block.2} parent=23 // pred_check_branch
        %133 = sbr.rel (%p131) target = $region28
      $region27: #{pixel_shuffle_block.2} parent=23 // pred_region
        %134 = vst [vmem:[%s1] sm:$0x1] 0.0
        %135 = vst [vmem:[%s2] sm:$0xff] 0.0
        %136 = vst [vmem:[%s2 + $0x8] sm:$0xff] 0.0
        %137 = vst [vmem:[%s2 + $0x10] sm:$0xff] 0.0
        %138 = vst [vmem:[%s2 + $0x18] sm:$0xff] 0.0
        %139 = vst [vmem:[%s2 + $0x20] sm:$0xff] 0.0
        %140 = vst [vmem:[%s2 + $0x28] sm:$0xff] 0.0
        %141 = vst [vmem:[%s2 + $0x30] sm:$0xff] 0.0
        %142 = vst [vmem:[%s2 + $0x38] sm:$0xff] 0.0
        %143 = vst [vmem:[%s2 + $0x40] sm:$0xff] 0.0
        %144 = vst [vmem:[%s2 + $0x48] sm:$0xff] 0.0
        %145 = vst [vmem:[%s2 + $0x50] sm:$0xff] 0.0
        %146 = vst [vmem:[%s2 + $0x58] sm:$0xff] 0.0
        %147 = vst [vmem:[%s2 + $0x60] sm:$0xff] 0.0
        %148 = vst [vmem:[%s2 + $0x68] sm:$0xff] 0.0
        %149 = vst [vmem:[%s2 + $0x70] sm:$0xff] 0.0
        %150 = vst [vmem:[%s2 + $0x78] sm:$0xff] 0.0
      $region28: #{pixel_shuffle_block.2} parent=23 // pred_fallthru
        _
      %v151 = vld [vmem:[%s127] sm:$0xf]
      %v152 = vld [vmem:[%s127 + $0x4] sm:$0xf]
      %v153 = vld [vmem:[%s127 + $0x8] sm:$0xf]
      %v154 = vld [vmem:[%s127 + $0xc] sm:$0xf]
      %v155 = vld [vmem:[%s127 + $0x10] sm:$0xf]
      %v156 = vld [vmem:[%s127 + $0x14] sm:$0xf]
      %v157 = vld [vmem:[%s127 + $0x18] sm:$0xf]
      %v158 = vld [vmem:[%s127 + $0x1c] sm:$0xf]
      %v159 = vld [vmem:[%s127 + $0x20] sm:$0xf]
      %v160 = vld [vmem:[%s127 + $0x24] sm:$0xf]
      %v161 = vld [vmem:[%s127 + $0x28] sm:$0xf]
      %v162 = vld [vmem:[%s127 + $0x2c] sm:$0xf]
      %v163 = vld [vmem:[%s127 + $0x30] sm:$0xf]
      %v164 = vld [vmem:[%s127 + $0x34] sm:$0xf]
      %v165 = vld [vmem:[%s127 + $0x38] sm:$0xf]
      %v166 = vld [vmem:[%s127 + $0x3c] sm:$0xf]
      %v167 = vld [vmem:[%s1] sm:$0x1]
      %v168 = vunpack.c.l.bf16 %v151
      %v169 = vunpack.c.l.bf16 %v152
      %v170 = vunpack.c.l.bf16 %v153
      %v171 = vunpack.c.l.bf16 %v154
      %v172 = vunpack.c.l.bf16 %v155
      %v173 = vunpack.c.l.bf16 %v156
      %v174 = vunpack.c.l.bf16 %v157
      %v175 = vunpack.c.l.bf16 %v158
      %v176 = vunpack.c.l.bf16 %v159
      %v177 = vunpack.c.l.bf16 %v160
      %v178 = vunpack.c.l.bf16 %v161
      %v179 = vunpack.c.l.bf16 %v162
      %v180 = vunpack.c.l.bf16 %v163
      %v181 = vunpack.c.l.bf16 %v164
      %v182 = vunpack.c.l.bf16 %v165
      %v183 = vunpack.c.l.bf16 %v166
      %v184 = vadd.f32 %v168, %v169
      %v185 = vadd.f32 %v184, %v170
      %v186 = vadd.f32 %v185, %v171
      %v187 = vadd.f32 %v186, %v172
      %v188 = vadd.f32 %v187, %v173
      %v189 = vadd.f32 %v188, %v174
      %v190 = vadd.f32 %v189, %v175
      %v191 = vadd.f32 %v190, %v176
      %v192 = vadd.f32 %v191, %v177
      %v193 = vadd.f32 %v192, %v178
      %v194 = vadd.f32 %v193, %v179
      %v195 = vadd.f32 %v194, %v180
      %v196 = vadd.f32 %v195, %v181
      %v197 = vadd.f32 %v196, %v182
      %v198 = vadd.f32 %v197, %v183
      %v199 = vrot.slane %v198, 4
      %v200 = vadd.f32 %v198, %v199
      %v201 = vrot.slane %v200, 2
      %v202 = vadd.f32 %v200, %v201
      %v203 = vrot.slane %v202, 1
      %v204 = vadd.f32 %v202, %v203
      %v205 = vadd.f32 %v167, %v204
      %206 = vst [vmem:[%s1] sm:$0x1] %v205
      %v207 = vld [vmem:[%s2] sm:$0xff]
      %v208 = vld [vmem:[%s2 + $0x8] sm:$0xff]
      %v209 = vld [vmem:[%s2 + $0x10] sm:$0xff]
      %v210 = vld [vmem:[%s2 + $0x18] sm:$0xff]
      %v211 = vld [vmem:[%s2 + $0x20] sm:$0xff]
      %v212 = vld [vmem:[%s2 + $0x28] sm:$0xff]
      %v213 = vld [vmem:[%s2 + $0x30] sm:$0xff]
      %v214 = vld [vmem:[%s2 + $0x38] sm:$0xff]
      %v215 = vld [vmem:[%s2 + $0x40] sm:$0xff]
      %v216 = vld [vmem:[%s2 + $0x48] sm:$0xff]
      %v217 = vld [vmem:[%s2 + $0x50] sm:$0xff]
      %v218 = vld [vmem:[%s2 + $0x58] sm:$0xff]
      %v219 = vld [vmem:[%s2 + $0x60] sm:$0xff]
      %v220 = vld [vmem:[%s2 + $0x68] sm:$0xff]
      %v221 = vld [vmem:[%s2 + $0x70] sm:$0xff]
      %v222 = vld [vmem:[%s2 + $0x78] sm:$0xff]
      %v239 = vunpack.c.l.b16 %v151
      %v240 = vunpack.c.l.b16 %v152
      %v241 = vunpack.c.l.b16 %v153
      %v242 = vunpack.c.l.b16 %v154
      %v243 = vunpack.c.l.b16 %v155
      %v244 = vunpack.c.l.b16 %v156
      %v245 = vunpack.c.l.b16 %v157
      %v246 = vunpack.c.l.b16 %v158
      %v247 = vunpack.c.l.b16 %v159
      %v248 = vunpack.c.l.b16 %v160
      %v249 = vunpack.c.l.b16 %v161
      %v250 = vunpack.c.l.b16 %v162
      %v251 = vunpack.c.l.b16 %v163
      %v252 = vunpack.c.l.b16 %v164
      %v253 = vunpack.c.l.b16 %v165
      %v254 = vunpack.c.l.b16 %v166
      %v255 = vpack.c.b16 %v240, %v239
      %v256 = vpack.c.b16 %v242, %v241
      %v257 = vpack.c.b16 %v244, %v243
      %v258 = vpack.c.b16 %v246, %v245
      %v259 = vpack.c.b16 %v248, %v247
      %v260 = vpack.c.b16 %v250, %v249
      %v261 = vpack.c.b16 %v252, %v251
      %v262 = vpack.c.b16 %v254, %v253
      %271 = vxpose.xlu0.c.b16.start [1/8] %v255, 128
      %272 = vxpose.xlu0.c.b16.cont [2/8] %v256, 128
      %273 = vxpose.xlu0.c.b16.cont [3/8] %v257, 128
      %274 = vxpose.xlu0.c.b16.cont [4/8] %v258, 128
      %275 = vxpose.xlu0.c.b16.cont [5/8] %v259, 128
      %276 = vxpose.xlu0.c.b16.cont [6/8] %v260, 128
      %277 = vxpose.xlu0.c.b16.cont [7/8] %v261, 128
      %278 = vxpose.xlu0.c.b16.end [8/8] %v262, 128
      %v279 = vpop.trf.xlu0
      %v280 = vpop.trf.xlu0
      %v281 = vpop.trf.xlu0
      %v282 = vpop.trf.xlu0
      %v283 = vpop.trf.xlu0
      %v284 = vpop.trf.xlu0
      %v285 = vpop.trf.xlu0
      %v286 = vpop.trf.xlu0
      %287 = vmatprep.subr.bf16.mxu0 0
      %288 = vmatpush1.bf16.msra.mxu0 %v262
      %289 = vmatprep.subr.bf16.mxu0 0
      %290 = vmatpush1.bf16.msra.mxu0 %v261
      %291 = vmatprep.subr.bf16.mxu0 0
      %292 = vmatpush1.bf16.msra.mxu0 %v260
      %293 = vmatprep.subr.bf16.mxu0 0
      %294 = vmatpush1.bf16.msra.mxu0 %v259
      %295 = vmatprep.subr.bf16.mxu0 0
      %296 = vmatpush1.bf16.msra.mxu0 %v258
      %297 = vmatprep.subr.bf16.mxu0 0
      %298 = vmatpush1.bf16.msra.mxu0 %v257
      %299 = vmatprep.subr.bf16.mxu0 0
      %300 = vmatpush1.bf16.msra.mxu0 %v256
      %301 = vmatprep.subr.bf16.mxu0 0
      %302 = vmatpush1.bf16.msra.mxu0 %v255
      %303 = vmatprep.subr.bf16.mxu0 0
      %304 = vmatpush2.bf16.msra.mxu0 0
      %305 = vmatprep.subr.bf16.mxu0 0
      %306 = vmatpush2.bf16.msra.mxu0 0
      %307 = vmatprep.subr.bf16.mxu0 0
      %308 = vmatpush2.bf16.msra.mxu0 0
      %309 = vmatprep.subr.bf16.mxu0 0
      %310 = vmatpush2.bf16.msra.mxu0 0
      %311 = vmatprep.subr.bf16.mxu0 0
      %312 = vmatpush2.bf16.msra.mxu0 0
      %313 = vmatprep.subr.bf16.mxu0 0
      %314 = vmatpush2.bf16.msra.mxu0 0
      %315 = vmatprep.subr.bf16.mxu0 0
      %316 = vmatpush2.bf16.msra.mxu0 0
      %317 = vmatprep.subr.bf16.mxu0 0
      %318 = vmatpush2.bf16.msra.mxu0 0
      %319 = vmatprep.mubr.bf16.mxu0 0
      %320 = vmatmul.mubr.bf16.gmra.mxu0 %v279
      %v321 = vpop.f32.mrf.mxu0
      %v322 = vadd.f32 0.0, %v321
      %v323 = vpop.f32.mrf.mxu0
      %v324 = vpop.f32.mrf.mxu0
      %v325 = vadd.f32 0.0, %v324
      %v326 = vpop.f32.mrf.mxu0
      %327 = vmatprep.mubr.bf16.mxu0 0
      %328 = vmatmul.mubr.bf16.gmra.mxu0 %v280
      %v329 = vpop.f32.mrf.mxu0
      %v330 = vadd.f32 0.0, %v329
      %v331 = vpop.f32.mrf.mxu0
      %v332 = vpop.f32.mrf.mxu0
      %v333 = vadd.f32 0.0, %v332
      %v334 = vpop.f32.mrf.mxu0
      %335 = vmatprep.mubr.bf16.mxu0 0
      %336 = vmatmul.mubr.bf16.gmra.mxu0 %v281
      %v337 = vpop.f32.mrf.mxu0
      %v338 = vadd.f32 0.0, %v337
      %v339 = vpop.f32.mrf.mxu0
      %v340 = vpop.f32.mrf.mxu0
      %v341 = vadd.f32 0.0, %v340
      %v342 = vpop.f32.mrf.mxu0
      %343 = vmatprep.mubr.bf16.mxu0 0
      %344 = vmatmul.mubr.bf16.gmra.mxu0 %v282
      %v345 = vpop.f32.mrf.mxu0
      %v346 = vadd.f32 0.0, %v345
      %v347 = vpop.f32.mrf.mxu0
      %v348 = vpop.f32.mrf.mxu0
      %v349 = vadd.f32 0.0, %v348
      %v350 = vpop.f32.mrf.mxu0
      %351 = vmatprep.mubr.bf16.mxu0 0
      %352 = vmatmul.mubr.bf16.gmra.mxu0 %v283
      %v353 = vpop.f32.mrf.mxu0
      %v354 = vadd.f32 0.0, %v353
      %v355 = vpop.f32.mrf.mxu0
      %v356 = vpop.f32.mrf.mxu0
      %v357 = vadd.f32 0.0, %v356
      %v358 = vpop.f32.mrf.mxu0
      %359 = vmatprep.mubr.bf16.mxu0 0
      %360 = vmatmul.mubr.bf16.gmra.mxu0 %v284
      %v361 = vpop.f32.mrf.mxu0
      %v362 = vadd.f32 0.0, %v361
      %v363 = vpop.f32.mrf.mxu0
      %v364 = vpop.f32.mrf.mxu0
      %v365 = vadd.f32 0.0, %v364
      %v366 = vpop.f32.mrf.mxu0
      %367 = vmatprep.mubr.bf16.mxu0 0
      %368 = vmatmul.mubr.bf16.gmra.mxu0 %v285
      %v369 = vpop.f32.mrf.mxu0
      %v370 = vadd.f32 0.0, %v369
      %v371 = vpop.f32.mrf.mxu0
      %v372 = vpop.f32.mrf.mxu0
      %v373 = vadd.f32 0.0, %v372
      %v374 = vpop.f32.mrf.mxu0
      %375 = vmatprep.mubr.bf16.mxu0 0
      %376 = vmatmul.mubr.bf16.gmra.mxu0 %v286
      %v377 = vpop.f32.mrf.mxu0
      %v378 = vadd.f32 0.0, %v377
      %v379 = vpop.f32.mrf.mxu0
      %v380 = vpop.f32.mrf.mxu0
      %v381 = vadd.f32 0.0, %v380
      %v382 = vpop.f32.mrf.mxu0
      %383 = vdwg.mxu0
      %v384 = vadd.f32 %v207, %v322
      %v385 = vadd.f32 %v208, %v325
      %v386 = vadd.f32 %v209, %v330
      %v387 = vadd.f32 %v210, %v333
      %v388 = vadd.f32 %v211, %v338
      %v389 = vadd.f32 %v212, %v341
      %v390 = vadd.f32 %v213, %v346
      %v391 = vadd.f32 %v214, %v349
      %v392 = vadd.f32 %v215, %v354
      %v393 = vadd.f32 %v216, %v357
      %v394 = vadd.f32 %v217, %v362
      %v395 = vadd.f32 %v218, %v365
      %v396 = vadd.f32 %v219, %v370
      %v397 = vadd.f32 %v220, %v373
      %v398 = vadd.f32 %v221, %v378
      %v399 = vadd.f32 %v222, %v381
      %400 = vst [vmem:[%s2] sm:$0xff] %v384
      %401 = vst [vmem:[%s2 + $0x8] sm:$0xff] %v385
      %402 = vst [vmem:[%s2 + $0x10] sm:$0xff] %v386
      %403 = vst [vmem:[%s2 + $0x18] sm:$0xff] %v387
      %404 = vst [vmem:[%s2 + $0x20] sm:$0xff] %v388
      %405 = vst [vmem:[%s2 + $0x28] sm:$0xff] %v389
      %406 = vst [vmem:[%s2 + $0x30] sm:$0xff] %v390
      %407 = vst [vmem:[%s2 + $0x38] sm:$0xff] %v391
      %408 = vst [vmem:[%s2 + $0x40] sm:$0xff] %v392
      %409 = vst [vmem:[%s2 + $0x48] sm:$0xff] %v393
      %410 = vst [vmem:[%s2 + $0x50] sm:$0xff] %v394
      %411 = vst [vmem:[%s2 + $0x58] sm:$0xff] %v395
      %412 = vst [vmem:[%s2 + $0x60] sm:$0xff] %v396
      %413 = vst [vmem:[%s2 + $0x68] sm:$0xff] %v397
      %414 = vst [vmem:[%s2 + $0x70] sm:$0xff] %v398
      %415 = vst [vmem:[%s2 + $0x78] sm:$0xff] %v399
      // Predicated region
      $region29: #{pixel_shuffle_block.2} parent=23 // pred_check
        %p416 = pneg %p53
      $region30: #{pixel_shuffle_block.2} parent=23 // pred_check_branch
        %418 = sbr.rel (%p416) target = $region32
      $region31: #{pixel_shuffle_block.2} parent=23 // pred_region
        _
      $region32: #{pixel_shuffle_block.2} parent=23 // pred_fallthru
        _
      // Predicated region
      $region33: #{pixel_shuffle_block.2} parent=23 // pred_check
        %p419 = pneg %p74
      $region34: #{pixel_shuffle_block.2} parent=23 // pred_check_branch
        %421 = sbr.rel (%p419) target = $region36
      $region35: #{pixel_shuffle_block.2} parent=23 // pred_region
        _
      $region36: #{pixel_shuffle_block.2} parent=23 // pred_fallthru
        _
      // Predicated region
      $region37: #{pixel_shuffle_block.2} parent=23 // pred_check
        %p422 = pneg %p53
      $region38: #{pixel_shuffle_block.2} parent=23 // pred_check_branch
        %424 = sbr.rel (%p422) target = $region40
      $region39: #{pixel_shuffle_block.2} parent=23 // pred_region
        _
      $region40: #{pixel_shuffle_block.2} parent=23 // pred_fallthru
        _
      // Predicated region
      $region41: #{pixel_shuffle_block.2} parent=23 // pred_check
        %p425 = pneg %p74
      $region42: #{pixel_shuffle_block.2} parent=23 // pred_check_branch
        %427 = sbr.rel (%p425) target = $region44
      $region43: #{pixel_shuffle_block.2} parent=23 // pred_region
        _
      $region44: #{pixel_shuffle_block.2} parent=23 // pred_fallthru
        _
    $region24: #{pixel_shuffle_block.2} parent=5 // pred_fallthru
      _
    %p428 = scmp.le.s32.totalorder 2, %s9
    // Predicated region
    $region45: #{pixel_shuffle_block.2} parent=5 // pred_check
      %p429 = pneg %p428
    $region46: #{pixel_shuffle_block.2} parent=5 // pred_check_branch
      %431 = sbr.rel (%p429) target = $region48
    $region47: #{pixel_shuffle_block.2} parent=5 // pred_region
      %s432 = ssub.s32 %s9, 2
    $region48: #{pixel_shuffle_block.2} parent=5 // pred_fallthru
      _
  $region6: #{pixel_shuffle_block.2} parent=0 // loop_footer
    %s13 = sadd.s32 1, %s9
  $region7: #{pixel_shuffle_block.2} parent=0 // loop_footer_branch
    %8 = sbr.rel target = $region3
  $region8: #{pixel_shuffle_block.2} parent=0 // loop_exit
    _

// kernel: tile.18
$region0: #{tile.18}
  #allocation0 [shape = 's32[1]{0}', space=sflag, size = 0x4, scoped, tag = 'scoped memory for tile.18']
  %s0 = inlined_call_operand.vmem [shape: f32[16], index: 0, kind: input, shape index: {}]
  %s1 = inlined_call_operand.vmem [shape: f32[32,16], index: 1, kind: output, shape index: {}]
  // Predicated region
  $region2: #{tile.18} parent=0 // pred_check
    _
  $region3: #{tile.18} parent=0 // pred_check_branch
    %3 = sbr.rel (0) target = $region5
  $region4: #{tile.18} parent=0 // pred_region
    _
  $region5: #{tile.18} parent=0 // pred_fallthru
    _
  %v4 = vld [vmem:[%s0] ss:$0 sm:$0xff]
  %5 = vst [vmem:[%s1] sm:$0xff] %v4
  %s6 = scalar_lea.vmem %s1, 8
  %7 = vst [vmem:[%s6] sm:$0xff] %v4
  %s8 = scalar_lea.vmem %s1, 16
  %9 = vst [vmem:[%s8] sm:$0xff] %v4
  %s10 = scalar_lea.vmem %s1, 24
  %11 = vst [vmem:[%s10] sm:$0xff] %v4

// kernel: tile.19
$region0: #{tile.19}
  %s0 = inlined_call_operand.vmem [shape: f32[32,16], index: 0, kind: input, shape index: {}]
  %s1 = inlined_call_operand.vmem [shape: f32[1,512], index: 1, kind: output, shape index: {}]
  $region1: #{tile.19} parent=0
    #allocation0 [shape = 'u8[16384]{0}', space=vmem, size = 0x4000, scoped, tag = 'scoped mem for output reshape']
    %v2 = vld [vmem:[%s0] ss:$8 sm:$0xf]
    %vm3 = vcmask 130048
    %4 = vst.msk [vmem:[#allocation0] ss:$8 sm:$0xf] %vm3, %v2
    %s5 = scalar_lea.vmem %s0, 7
    %v6 = vld [vmem:[%s5] ss:$8 sm:$0xf]
    %7 = vrot.lane.b32.xlu0 %v6, 112
    %v8 = vpop.permute.xlu0 %7
    %vm9 = vcmask 1048448
    %10 = vst.msk [vmem:[#allocation0] ss:$8 sm:$0xf] %vm9, %v8
    %s11 = scalar_lea.vmem %s0, 6
    %v12 = vld [vmem:[%s11] ss:$8 sm:$0xf]
    %13 = vrot.lane.b32.xlu0 %v12, 96
    %v14 = vpop.permute.xlu0 %13
    %vm15 = vcmask 917248
    %16 = vst.msk [vmem:[#allocation0] ss:$8 sm:$0xf] %vm15, %v14
    %s17 = scalar_lea.vmem %s0, 5
    %v18 = vld [vmem:[%s17] ss:$8 sm:$0xf]
    %19 = vrot.lane.b32.xlu0 %v18, 80
    %v20 = vpop.permute.xlu0 %19
    %vm21 = vcmask 786048
    %22 = vst.msk [vmem:[#allocation0] ss:$8 sm:$0xf] %vm21, %v20
    %s23 = scalar_lea.vmem %s0, 4
    %v24 = vld [vmem:[%s23] ss:$8 sm:$0xf]
    %25 = vrot.lane.b32.xlu0 %v24, 64
    %v26 = vpop.permute.xlu0 %25
    %vm27 = vcmask 654848
    %28 = vst.msk [vmem:[#allocation0] ss:$8 sm:$0xf] %vm27, %v26
    %s29 = scalar_lea.vmem %s0, 3
    %v30 = vld [vmem:[%s29] ss:$8 sm:$0xf]
    %31 = vrot.lane.b32.xlu0 %v30, 48
    %v32 = vpop.permute.xlu0 %31
    %vm33 = vcmask 523648
    %34 = vst.msk [vmem:[#allocation0] ss:$8 sm:$0xf] %vm33, %v32
    %s35 = scalar_lea.vmem %s0, 2
    %v36 = vld [vmem:[%s35] ss:$8 sm:$0xf]
    %37 = vrot.lane.b32.xlu0 %v36, 32
    %v38 = vpop.permute.xlu0 %37
    %vm39 = vcmask 392448
    %40 = vst.msk [vmem:[#allocation0] ss:$8 sm:$0xf] %vm39, %v38
    %s41 = scalar_lea.vmem %s0, 1
    %v42 = vld [vmem:[%s41] ss:$8 sm:$0xf]
    %43 = vrot.lane.b32.xlu0 %v42, 16
    %v44 = vpop.permute.xlu0 %43
    %vm45 = vcmask 261248
    %46 = vst.msk [vmem:[#allocation0] ss:$8 sm:$0xf] %vm45, %v44
    %s48 = sshll.u32 1, 1
    %s49 = ssub.s32 %s48, 1
    %v51 = vld [vmem:[#allocation0] sm:%s49]
    %s52 = sshll.u32 1, 1
    %s53 = ssub.s32 %s52, 1
    %54 = vst [vmem:[%s1] sm:%s53] %v51
    %s55 = scalar_lea.vmem [#allocation0], 8
    %v56 = vld [vmem:[%s55] sm:%s49]
    %s57 = sshll.u32 1, 1
    %s58 = ssub.s32 %s57, 1
    %s59 = scalar_lea.vmem %s1, 1
    %60 = vst [vmem:[%s59] sm:%s58] %v56
    %s61 = scalar_lea.vmem [#allocation0], 16
    %v62 = vld [vmem:[%s61] sm:%s49]
    %s63 = sshll.u32 1, 1
    %s64 = ssub.s32 %s63, 1
    %s65 = smul.addr 1, 2
    %s66 = scalar_lea.vmem %s1, %s65
    %67 = vst [vmem:[%s66] sm:%s64] %v62
    %s68 = scalar_lea.vmem [#allocation0], 24
    %v69 = vld [vmem:[%s68] sm:%s49]
    %s70 = sshll.u32 1, 1
    %s71 = ssub.s32 %s70, 1
    %s72 = smul.addr 1, 3
    %s73 = scalar_lea.vmem %s1, %s72
    %74 = vst [vmem:[%s73] sm:%s71] %v69

// kernel: mul.41
$region0: #{mul.41}
  %s0 = inlined_call_operand.vmem [shape: f32[32,16], index: 0, kind: input, shape index: {}]
  %s1 = inlined_call_operand.vmem [shape: f32[512], index: 1, kind: output, shape index: {}]
  $region1: #{mul.41} parent=0
    #allocation0 [shape = 'u8[4096]{0}', space=vmem, size = 0x1000, scoped, tag = 'scoped mem for output reshape']
    %v2 = vld [vmem:[%s0] ss:$8 sm:$0xf]
    %vm3 = vcmask 130048
    %4 = vst.msk [vmem:[#allocation0] sm:$0xf] %vm3, %v2
    %s5 = scalar_lea.vmem %s0, 7
    %v6 = vld [vmem:[%s5] ss:$8 sm:$0xf]
    %7 = vrot.lane.b32.xlu0 %v6, 112
    %v8 = vpop.permute.xlu0 %7
    %vm9 = vcmask 1048448
    %10 = vst.msk [vmem:[#allocation0] sm:$0xf] %vm9, %v8
    %s11 = scalar_lea.vmem %s0, 6
    %v12 = vld [vmem:[%s11] ss:$8 sm:$0xf]
    %13 = vrot.lane.b32.xlu0 %v12, 96
    %v14 = vpop.permute.xlu0 %13
    %vm15 = vcmask 917248
    %16 = vst.msk [vmem:[#allocation0] sm:$0xf] %vm15, %v14
    %s17 = scalar_lea.vmem %s0, 5
    %v18 = vld [vmem:[%s17] ss:$8 sm:$0xf]
    %19 = vrot.lane.b32.xlu0 %v18, 80
    %v20 = vpop.permute.xlu0 %19
    %vm21 = vcmask 786048
    %22 = vst.msk [vmem:[#allocation0] sm:$0xf] %vm21, %v20
    %s23 = scalar_lea.vmem %s0, 4
    %v24 = vld [vmem:[%s23] ss:$8 sm:$0xf]
    %25 = vrot.lane.b32.xlu0 %v24, 64
    %v26 = vpop.permute.xlu0 %25
    %vm27 = vcmask 654848
    %28 = vst.msk [vmem:[#allocation0] sm:$0xf] %vm27, %v26
    %s29 = scalar_lea.vmem %s0, 3
    %v30 = vld [vmem:[%s29] ss:$8 sm:$0xf]
    %31 = vrot.lane.b32.xlu0 %v30, 48
    %v32 = vpop.permute.xlu0 %31
    %vm33 = vcmask 523648
    %34 = vst.msk [vmem:[#allocation0] sm:$0xf] %vm33, %v32
    %s35 = scalar_lea.vmem %s0, 2
    %v36 = vld [vmem:[%s35] ss:$8 sm:$0xf]
    %37 = vrot.lane.b32.xlu0 %v36, 32
    %v38 = vpop.permute.xlu0 %37
    %vm39 = vcmask 392448
    %40 = vst.msk [vmem:[#allocation0] sm:$0xf] %vm39, %v38
    %s41 = scalar_lea.vmem %s0, 1
    %v42 = vld [vmem:[%s41] ss:$8 sm:$0xf]
    %43 = vrot.lane.b32.xlu0 %v42, 16
    %v44 = vpop.permute.xlu0 %43
    %vm45 = vcmask 261248
    %46 = vst.msk [vmem:[#allocation0] sm:$0xf] %vm45, %v44
    %s48 = sshll.u32 1, 4
    %s49 = ssub.s32 %s48, 1
    %v51 = vld [vmem:[#allocation0] sm:%s49]
    %s52 = sshll.u32 1, 4
    %s53 = ssub.s32 %s52, 1
    %54 = vst [vmem:[%s1] sm:%s53] %v51

// kernel: pixel_shuffle_block.3
$region0: #{pixel_shuffle_block.3}
  #allocation0 [shape = 'u32[]', space=smem, size = 0x4, offset = 0x4, fixed_abs, tag = 'smem constant byte address 0x4 - core index']
  #allocation1 [shape = 'u32[144,128]{1,0:T(1,128)}', space=vmem, size = 0x12000, scoped, tag = 'internal scratch']
  %s0 = inlined_call_operand.vmem [shape: bf16[256,128], index: 0, kind: input, shape index: {}]
  %s1 = inlined_call_operand.vmem [shape: bf16[128,512], index: 1, kind: input, shape index: {}]
  %s2 = inlined_call_operand.vmem [shape: f32[1,512], index: 2, kind: input, shape index: {}]
  %s3 = inlined_call_operand.vmem [shape: f32[256,512], index: 3, kind: output, shape index: {}]
  %s4 = sld [smem:[#allocation0]]
  $region45: #{pixel_shuffle_block.3} parent=0
    _
  %s6 = ssub.s32 1, %s4
  %s7 = scalar_select 0, %s6, %s4
  loop: start=0, step=1, limit=4
  $region2: #{pixel_shuffle_block.3} parent=0 // loop_pre_header
    _
  $region3: #{pixel_shuffle_block.3} parent=0 // loop_header
    %s9 = sphi 0, %s13
    %p10 = scmp.ge.s32.totalorder %s9, 4
    %s19 = sphi 0, %s21
    %s22 = sphi 0, %s19
    %s23 = sphi 0, %s22
    %s39 = sphi 0, %s23
    %s43 = sphi 0, %s43
    %s45 = sphi 0, %s43
    %s46 = sphi 0, %s45
    %s60 = sphi 0, %s46
    %s64 = sphi 0, %s64
    %s66 = sphi 0, %s64
    %s67 = sphi 0, %s66
    %s81 = sphi 0, %s67
    %s87 = sphi 0, %s89
    %s90 = sphi 0, %s87
    %s91 = sphi 0, %s90
    %s107 = sphi 0, %s91
  $region4: #{pixel_shuffle_block.3} parent=0 // loop_header_branch
    %12 = sbr.rel (%p10) target = $region8
  $region5: #{pixel_shuffle_block.3} parent=0 // loop_body
    %s14 = ssub.s32 %s9, 1
    %s15 = ssub.s32 %s9, 2
    %s16 = sadd.s32 %s9, 1
    %s17 = ssub.s32 %s9, %s16
    %p18 = scmp.eq.s32.totalorder %s17, 0
    %s20 = sadd.s32 %s19, 1
    %s21 = scalar_select %p18, %s19, %s20
    %p24 = pneg %p18
    %p25 = scmp.eq.s32.totalorder %s9, 1
    %p26 = por %p24, %p25
    %p27 = scmp.ne.s32.totalorder %s19, %s22
    %p28 = scmp.eq.s32.totalorder %s9, 0
    %p29 = por %p27, %p28
    %p30 = scmp.ne.s32.totalorder %s19, %s22
    %p31 = scmp.eq.s32.totalorder %s14, 1
    %p32 = por %p30, %p31
    %p33 = scmp.ne.s32.totalorder %s22, %s23
    %p34 = scmp.eq.s32.totalorder %s14, 0
    %p35 = por %p33, %p34
    %p36 = scmp.ne.s32.totalorder %s22, %s23
    %p37 = scmp.eq.s32.totalorder %s15, 1
    %p38 = por %p36, %p37
    %p40 = scmp.ne.s32.totalorder %s23, %s39
    %p41 = scmp.eq.s32.totalorder %s15, 0
    %p42 = por %p40, %p41
    %s44 = sadd.s32 %s43, 1
    %p47 = scmp.eq.s32.totalorder %s9, 1
    %p48 = scmp.ne.s32.totalorder %s43, %s45
    %p49 = scmp.eq.s32.totalorder %s9, 0
    %p50 = por %p48, %p49
    %p51 = scmp.ne.s32.totalorder %s43, %s45
    %p52 = scmp.eq.s32.totalorder %s14, 1
    %p53 = por %p51, %p52
    %p54 = scmp.ne.s32.totalorder %s45, %s46
    %p55 = scmp.eq.s32.totalorder %s14, 0
    %p56 = por %p54, %p55
    %p57 = scmp.ne.s32.totalorder %s45, %s46
    %p58 = scmp.eq.s32.totalorder %s15, 1
    %p59 = por %p57, %p58
    %p61 = scmp.ne.s32.totalorder %s46, %s60
    %p62 = scmp.eq.s32.totalorder %s15, 0
    %p63 = por %p61, %p62
    %s65 = sadd.s32 %s64, 1
    %p68 = scmp.eq.s32.totalorder %s9, 1
    %p69 = scmp.ne.s32.totalorder %s64, %s66
    %p70 = scmp.eq.s32.totalorder %s9, 0
    %p71 = por %p69, %p70
    %p72 = scmp.ne.s32.totalorder %s64, %s66
    %p73 = scmp.eq.s32.totalorder %s14, 1
    %p74 = por %p72, %p73
    %p75 = scmp.ne.s32.totalorder %s66, %s67
    %p76 = scmp.eq.s32.totalorder %s14, 0
    %p77 = por %p75, %p76
    %p78 = scmp.ne.s32.totalorder %s66, %s67
    %p79 = scmp.eq.s32.totalorder %s15, 1
    %p80 = por %p78, %p79
    %p82 = scmp.ne.s32.totalorder %s67, %s81
    %p83 = scmp.eq.s32.totalorder %s15, 0
    %p84 = por %p82, %p83
    %s85 = ssub.s32 %s9, %s16
    %p86 = scmp.eq.s32.totalorder %s85, 0
    %s88 = sadd.s32 %s87, 1
    %s89 = scalar_select %p86, %s87, %s88
    %p92 = pneg %p86
    %p93 = scmp.eq.s32.totalorder %s9, 1
    %p94 = por %p92, %p93
    %p95 = scmp.ne.s32.totalorder %s87, %s90
    %p96 = scmp.eq.s32.totalorder %s9, 0
    %p97 = por %p95, %p96
    %p98 = scmp.ne.s32.totalorder %s87, %s90
    %p99 = scmp.eq.s32.totalorder %s14, 1
    %p100 = por %p98, %p99
    %p101 = scmp.ne.s32.totalorder %s90, %s91
    %p102 = scmp.eq.s32.totalorder %s14, 0
    %p103 = por %p101, %p102
    %p104 = scmp.ne.s32.totalorder %s90, %s91
    %p105 = scmp.eq.s32.totalorder %s15, 1
    %p106 = por %p104, %p105
    %p108 = scmp.ne.s32.totalorder %s91, %s107
    %p109 = scmp.eq.s32.totalorder %s15, 0
    %p110 = por %p108, %p109
    %p111 = scmp.le.s32.totalorder 1, %s9
    %p112 = scmp.lt.s32.totalorder %s9, 3
    %p113 = pnand %p111, %p112
    %p114 = pneg %p113
    // Predicated region
    $region9: #{pixel_shuffle_block.3} parent=5 // pred_check
      _
    $region10: #{pixel_shuffle_block.3} parent=5 // pred_check_branch
      %116 = sbr.rel (%p113) target = $region12
    $region11: #{pixel_shuffle_block.3} parent=5 // pred_region
      %s117 = ssub.s32 %s9, 1
      // Predicated region
      $region13: #{pixel_shuffle_block.3} parent=11 // pred_check
        %p118 = pneg %p56
      $region14: #{pixel_shuffle_block.3} parent=11 // pred_check_branch
        %120 = sbr.rel (%p118) target = $region16
      $region15: #{pixel_shuffle_block.3} parent=11 // pred_region
        _
      $region16: #{pixel_shuffle_block.3} parent=11 // pred_fallthru
        _
      // Predicated region
      $region17: #{pixel_shuffle_block.3} parent=11 // pred_check
        %p121 = pneg %p77
      $region18: #{pixel_shuffle_block.3} parent=11 // pred_check_branch
        %123 = sbr.rel (%p121) target = $region20
      $region19: #{pixel_shuffle_block.3} parent=11 // pred_region
        _
      $region20: #{pixel_shuffle_block.3} parent=11 // pred_fallthru
        _
    $region12: #{pixel_shuffle_block.3} parent=5 // pred_fallthru
      _
    %p124 = scmp.lt.s32.totalorder %s9, 2
    // Predicated region
    $region21: #{pixel_shuffle_block.3} parent=5 // pred_check
      %p125 = pneg %p124
    $region22: #{pixel_shuffle_block.3} parent=5 // pred_check_branch
      %127 = sbr.rel (%p125) target = $region24
    $region23: #{pixel_shuffle_block.3} parent=5 // pred_region
      // Predicated region
      $region25: #{pixel_shuffle_block.3} parent=23 // pred_check
        %p128 = pneg %p29
      $region26: #{pixel_shuffle_block.3} parent=23 // pred_check_branch
        %130 = sbr.rel (%p128) target = $region28
      $region27: #{pixel_shuffle_block.3} parent=23 // pred_region
        %s131 = smul.u32 16, %s9
        %p132 = scmp.lt.s32.totalorder %s131, 31
        %s133 = scalar_select %p132, %s131, 31
        %s134 = smul.addr %s133, 4
        %s135 = scalar_lea.vmem %s0, %s134
        %s136 = smul.u32 16, %s9
      $region28: #{pixel_shuffle_block.3} parent=23 // pred_fallthru
        _
    $region24: #{pixel_shuffle_block.3} parent=5 // pred_fallthru
      _
    %p137 = scmp.le.s32.totalorder 1, %s9
    %p138 = scmp.lt.s32.totalorder %s9, 3
    %p139 = pnand %p137, %p138
    %p140 = pneg %p139
    // Predicated region
    $region29: #{pixel_shuffle_block.3} parent=5 // pred_check
      _
    $region30: #{pixel_shuffle_block.3} parent=5 // pred_check_branch
      %142 = sbr.rel (%p139) target = $region32
    $region31: #{pixel_shuffle_block.3} parent=5 // pred_region
      %s143 = ssub.s32 %s9, 1
      %s144 = smul.u32 16, %s14
      %p145 = scmp.lt.s32.totalorder %s144, 31
      %s146 = scalar_select %p145, %s144, 31
      %s147 = smul.addr %s146, 4
      %s148 = scalar_lea.vmem %s0, %s147
      %p149 = pneg %p35
      %p150 = pneg %p32
      %p151 = pneg %p56
      %p152 = pneg %p53
      %p153 = pneg %p77
      %p154 = pneg %p74
      %p155 = pneg %p103
      %p156 = pneg %p100
      %s157 = smul.u32 16, %s14
      %p158 = scmp.lt.s32.totalorder %s157, 31
      %s159 = scalar_select %p158, %s157, 31
      %s160 = smul.addr %s159, 4
      %s161 = smul.addr %s160, 8
      %s162 = scalar_lea.vmem %s3, %s161
      %s163 = smul.u32 16, %s14
      %p164 = scmp.lt.s32.totalorder %s163, 31
      %s165 = scalar_select %p164, %s163, 31
      %s166 = smul.addr %s165, 4
      %s167 = scalar_lea.vmem %s0, %s166
      %s168 = smul.u32 16, %s14
      %s169 = smul.u32 16, %s14
      %p170 = scmp.lt.s32.totalorder %s169, 31
      %s171 = scalar_select %p170, %s169, 31
      %s172 = smul.addr %s171, 4
      %s173 = smul.addr %s172, 8
      %s174 = scalar_lea.vmem %s3, %s173
      %s175 = smul.u32 16, %s14
      %v177 = vld [vmem:[%s167] sm:$0xf]
      %v178 = vld [vmem:[%s167 + $0x4] sm:$0xf]
      %v179 = vld [vmem:[%s167 + $0x8] sm:$0xf]
      %v180 = vld [vmem:[%s167 + $0xc] sm:$0xf]
      %v181 = vld [vmem:[%s167 + $0x10] sm:$0xf]
      %v182 = vld [vmem:[%s167 + $0x14] sm:$0xf]
      %v183 = vld [vmem:[%s167 + $0x18] sm:$0xf]
      %v184 = vld [vmem:[%s167 + $0x1c] sm:$0xf]
      %v185 = vld [vmem:[%s167 + $0x20] sm:$0xf]
      %v186 = vld [vmem:[%s167 + $0x24] sm:$0xf]
      %v187 = vld [vmem:[%s167 + $0x28] sm:$0xf]
      %v188 = vld [vmem:[%s167 + $0x2c] sm:$0xf]
      %v189 = vld [vmem:[%s167 + $0x30] sm:$0xf]
      %v190 = vld [vmem:[%s167 + $0x34] sm:$0xf]
      %v191 = vld [vmem:[%s167 + $0x38] sm:$0xf]
      %v192 = vld [vmem:[%s167 + $0x3c] sm:$0xf]
      %v193 = vld [vmem:[%s1] sm:$0xff]
      %v194 = vld [vmem:[%s1 + $0x8] sm:$0xff]
      %v195 = vld [vmem:[%s1 + $0x10] sm:$0xff]
      %v196 = vld [vmem:[%s1 + $0x18] sm:$0xff]
      %v197 = vld [vmem:[%s1 + $0x20] sm:$0xff]
      %v198 = vld [vmem:[%s1 + $0x28] sm:$0xff]
      %v199 = vld [vmem:[%s1 + $0x30] sm:$0xff]
      %v200 = vld [vmem:[%s1 + $0x38] sm:$0xff]
      %v201 = vld [vmem:[%s1 + $0x40] sm:$0xff]
      %v202 = vld [vmem:[%s1 + $0x48] sm:$0xff]
      %v203 = vld [vmem:[%s1 + $0x50] sm:$0xff]
      %v204 = vld [vmem:[%s1 + $0x58] sm:$0xff]
      %v205 = vld [vmem:[%s1 + $0x60] sm:$0xff]
      %v206 = vld [vmem:[%s1 + $0x68] sm:$0xff]
      %v207 = vld [vmem:[%s1 + $0x70] sm:$0xff]
      %v208 = vld [vmem:[%s1 + $0x78] sm:$0xff]
      %v209 = vld [vmem:[%s1 + $0x80] sm:$0xff]
      %v210 = vld [vmem:[%s1 + $0x88] sm:$0xff]
      %v211 = vld [vmem:[%s1 + $0x90] sm:$0xff]
      %v212 = vld [vmem:[%s1 + $0x98] sm:$0xff]
      %v213 = vld [vmem:[%s1 + $0xa0] sm:$0xff]
      %v214 = vld [vmem:[%s1 + $0xa8] sm:$0xff]
      %v215 = vld [vmem:[%s1 + $0xb0] sm:$0xff]
      %v216 = vld [vmem:[%s1 + $0xb8] sm:$0xff]
      %v217 = vld [vmem:[%s1 + $0xc0] sm:$0xff]
      %v218 = vld [vmem:[%s1 + $0xc8] sm:$0xff]
      %v219 = vld [vmem:[%s1 + $0xd0] sm:$0xff]
      %v220 = vld [vmem:[%s1 + $0xd8] sm:$0xff]
      %v221 = vld [vmem:[%s1 + $0xe0] sm:$0xff]
      %v222 = vld [vmem:[%s1 + $0xe8] sm:$0xff]
      %v223 = vld [vmem:[%s1 + $0xf0] sm:$0xff]
      %v224 = vld [vmem:[%s1 + $0xf8] sm:$0xff]
      %v225 = vld [vmem:[%s2] sm:$0xf]
      %v227 = vlaneseq
      %v228 = vshrl.u32 %v227, 7
      %v229 = vsub.s32 0, %v228
      %v230 = vrot.slane %v225, %v229
      %v231 = vlaneseq
      %v232 = vshrl.u32 %v231, 7
      %v233 = vsub.s32 1, %v232
      %v234 = vrot.slane %v225, %v233
      %v235 = vlaneseq
      %v236 = vshrl.u32 %v235, 7
      %v237 = vsub.s32 2, %v236
      %v238 = vrot.slane %v225, %v237
      %v239 = vlaneseq
      %v240 = vshrl.u32 %v239, 7
      %v241 = vsub.s32 3, %v240
      %v242 = vrot.slane %v225, %v241
      %v263 = vunpack.c.l.b16 %v177
      %v264 = vunpack.c.l.b16 %v178
      %v265 = vunpack.c.l.b16 %v179
      %v266 = vunpack.c.l.b16 %v180
      %v267 = vunpack.c.l.b16 %v181
      %v268 = vunpack.c.l.b16 %v182
      %v269 = vunpack.c.l.b16 %v183
      %v270 = vunpack.c.l.b16 %v184
      %v271 = vunpack.c.l.b16 %v185
      %v272 = vunpack.c.l.b16 %v186
      %v273 = vunpack.c.l.b16 %v187
      %v274 = vunpack.c.l.b16 %v188
      %v275 = vunpack.c.l.b16 %v189
      %v276 = vunpack.c.l.b16 %v190
      %v277 = vunpack.c.l.b16 %v191
      %v278 = vunpack.c.l.b16 %v192
      %v279 = vpack.c.b16 %v264, %v263
      %v280 = vpack.c.b16 %v266, %v265
      %v281 = vpack.c.b16 %v268, %v267
      %v282 = vpack.c.b16 %v270, %v269
      %v283 = vpack.c.b16 %v272, %v271
      %v284 = vpack.c.b16 %v274, %v273
      %v285 = vpack.c.b16 %v276, %v275
      %v286 = vpack.c.b16 %v278, %v277
      %v327 = vunpack.c.l.b16 %v193
      %v328 = vunpack.c.h.b16 %v193
      %v329 = vunpack.c.l.b16 %v194
      %v330 = vunpack.c.h.b16 %v194
      %v331 = vunpack.c.l.b16 %v195
      %v332 = vunpack.c.h.b16 %v195
      %v333 = vunpack.c.l.b16 %v196
      %v334 = vunpack.c.h.b16 %v196
      %v335 = vunpack.c.l.b16 %v197
      %v336 = vunpack.c.h.b16 %v197
      %v337 = vunpack.c.l.b16 %v198
      %v338 = vunpack.c.h.b16 %v198
      %v339 = vunpack.c.l.b16 %v199
      %v340 = vunpack.c.h.b16 %v199
      %v341 = vunpack.c.l.b16 %v200
      %v342 = vunpack.c.h.b16 %v200
      %v343 = vunpack.c.l.b16 %v201
      %v344 = vunpack.c.h.b16 %v201
      %v345 = vunpack.c.l.b16 %v202
      %v346 = vunpack.c.h.b16 %v202
      %v347 = vunpack.c.l.b16 %v203
      %v348 = vunpack.c.h.b16 %v203
      %v349 = vunpack.c.l.b16 %v204
      %v350 = vunpack.c.h.b16 %v204
      %v351 = vunpack.c.l.b16 %v205
      %v352 = vunpack.c.h.b16 %v205
      %v353 = vunpack.c.l.b16 %v206
      %v354 = vunpack.c.h.b16 %v206
      %v355 = vunpack.c.l.b16 %v207
      %v356 = vunpack.c.h.b16 %v207
      %v357 = vunpack.c.l.b16 %v208
      %v358 = vunpack.c.h.b16 %v208
      %v359 = vunpack.c.l.b16 %v209
      %v360 = vunpack.c.h.b16 %v209
      %v361 = vunpack.c.l.b16 %v210
      %v362 = vunpack.c.h.b16 %v210
      %v363 = vunpack.c.l.b16 %v211
      %v364 = vunpack.c.h.b16 %v211
      %v365 = vunpack.c.l.b16 %v212
      %v366 = vunpack.c.h.b16 %v212
      %v367 = vunpack.c.l.b16 %v213
      %v368 = vunpack.c.h.b16 %v213
      %v369 = vunpack.c.l.b16 %v214
      %v370 = vunpack.c.h.b16 %v214
      %v371 = vunpack.c.l.b16 %v215
      %v372 = vunpack.c.h.b16 %v215
      %v373 = vunpack.c.l.b16 %v216
      %v374 = vunpack.c.h.b16 %v216
      %v375 = vunpack.c.l.b16 %v217
      %v376 = vunpack.c.h.b16 %v217
      %v377 = vunpack.c.l.b16 %v218
      %v378 = vunpack.c.h.b16 %v218
      %v379 = vunpack.c.l.b16 %v219
      %v380 = vunpack.c.h.b16 %v219
      %v381 = vunpack.c.l.b16 %v220
      %v382 = vunpack.c.h.b16 %v220
      %v383 = vunpack.c.l.b16 %v221
      %v384 = vunpack.c.h.b16 %v221
      %v385 = vunpack.c.l.b16 %v222
      %v386 = vunpack.c.h.b16 %v222
      %v387 = vunpack.c.l.b16 %v223
      %v388 = vunpack.c.h.b16 %v223
      %v389 = vunpack.c.l.b16 %v224
      %v390 = vunpack.c.h.b16 %v224
      %v391 = vpack.c.b16 %v331, %v327
      %v392 = vpack.c.b16 %v332, %v328
      %v393 = vpack.c.b16 %v333, %v329
      %v394 = vpack.c.b16 %v334, %v330
      %v395 = vpack.c.b16 %v339, %v335
      %v396 = vpack.c.b16 %v340, %v336
      %v397 = vpack.c.b16 %v341, %v337
      %v398 = vpack.c.b16 %v342, %v338
      %v399 = vpack.c.b16 %v347, %v343
      %v400 = vpack.c.b16 %v348, %v344
      %v401 = vpack.c.b16 %v349, %v345
      %v402 = vpack.c.b16 %v350, %v346
      %v403 = vpack.c.b16 %v355, %v351
      %v404 = vpack.c.b16 %v356, %v352
      %v405 = vpack.c.b16 %v357, %v353
      %v406 = vpack.c.b16 %v358, %v354
      %v407 = vpack.c.b16 %v363, %v359
      %v408 = vpack.c.b16 %v364, %v360
      %v409 = vpack.c.b16 %v365, %v361
      %v410 = vpack.c.b16 %v366, %v362
      %v411 = vpack.c.b16 %v371, %v367
      %v412 = vpack.c.b16 %v372, %v368
      %v413 = vpack.c.b16 %v373, %v369
      %v414 = vpack.c.b16 %v374, %v370
      %v415 = vpack.c.b16 %v379, %v375
      %v416 = vpack.c.b16 %v380, %v376
      %v417 = vpack.c.b16 %v381, %v377
      %v418 = vpack.c.b16 %v382, %v378
      %v419 = vpack.c.b16 %v387, %v383
      %v420 = vpack.c.b16 %v388, %v384
      %v421 = vpack.c.b16 %v389, %v385
      %v422 = vpack.c.b16 %v390, %v386
      %455 = vmatprep.subr.bf16.mxu0 %v420
      %456 = vmatpush1.bf16.msra.mxu0 %v419
      %457 = vmatprep.subr.bf16.mxu0 %v416
      %458 = vmatpush1.bf16.msra.mxu0 %v415
      %459 = vmatprep.subr.bf16.mxu0 %v412
      %460 = vmatpush1.bf16.msra.mxu0 %v411
      %461 = vmatprep.subr.bf16.mxu0 %v408
      %462 = vmatpush1.bf16.msra.mxu0 %v407
      %463 = vmatprep.subr.bf16.mxu0 %v404
      %464 = vmatpush1.bf16.msra.mxu0 %v403
      %465 = vmatprep.subr.bf16.mxu0 %v400
      %466 = vmatpush1.bf16.msra.mxu0 %v399
      %467 = vmatprep.subr.bf16.mxu0 %v396
      %468 = vmatpush1.bf16.msra.mxu0 %v395
      %469 = vmatprep.subr.bf16.mxu0 %v392
      %470 = vmatpush1.bf16.msra.mxu0 %v391
      %471 = vmatprep.subr.bf16.mxu0 0
      %472 = vmatpush2.bf16.msra.mxu0 0
      %473 = vmatprep.subr.bf16.mxu0 0
      %474 = vmatpush2.bf16.msra.mxu0 0
      %475 = vmatprep.subr.bf16.mxu0 0
      %476 = vmatpush2.bf16.msra.mxu0 0
      %477 = vmatprep.subr.bf16.mxu0 0
      %478 = vmatpush2.bf16.msra.mxu0 0
      %479 = vmatprep.subr.bf16.mxu0 0
      %480 = vmatpush2.bf16.msra.mxu0 0
      %481 = vmatprep.subr.bf16.mxu0 0
      %482 = vmatpush2.bf16.msra.mxu0 0
      %483 = vmatprep.subr.bf16.mxu0 0
      %484 = vmatpush2.bf16.msra.mxu0 0
      %485 = vmatprep.subr.bf16.mxu0 0
      %486 = vmatpush2.bf16.msra.mxu0 0
      %487 = vmatprep.mubr.bf16.mxu0 0
      %488 = vmatmul.mubr.bf16.gmra.mxu0 %v279
      %v489 = vpop.f32.mrf.mxu0
      %v490 = vadd.f32 %v230, %v489
      %v491 = vpop.f32.mrf.mxu0
      %v492 = vadd.f32 %v234, %v491
      %v493 = vpop.f32.mrf.mxu0
      %v494 = vadd.f32 %v230, %v493
      %v495 = vpop.f32.mrf.mxu0
      %v496 = vadd.f32 %v234, %v495
      %497 = vmatprep.mubr.bf16.mxu0 0
      %498 = vmatmul.mubr.bf16.gmra.mxu0 %v280
      %v499 = vpop.f32.mrf.mxu0
      %v500 = vadd.f32 %v230, %v499
      %v501 = vpop.f32.mrf.mxu0
      %v502 = vadd.f32 %v234, %v501
      %v503 = vpop.f32.mrf.mxu0
      %v504 = vadd.f32 %v230, %v503
      %v505 = vpop.f32.mrf.mxu0
      %v506 = vadd.f32 %v234, %v505
      %507 = vmatprep.mubr.bf16.mxu0 0
      %508 = vmatmul.mubr.bf16.gmra.mxu0 %v281
      %v509 = vpop.f32.mrf.mxu0
      %v510 = vadd.f32 %v230, %v509
      %v511 = vpop.f32.mrf.mxu0
      %v512 = vadd.f32 %v234, %v511
      %v513 = vpop.f32.mrf.mxu0
      %v514 = vadd.f32 %v230, %v513
      %v515 = vpop.f32.mrf.mxu0
      %v516 = vadd.f32 %v234, %v515
      %517 = vmatprep.mubr.bf16.mxu0 0
      %518 = vmatmul.mubr.bf16.gmra.mxu0 %v282
      %v519 = vpop.f32.mrf.mxu0
      %v520 = vadd.f32 %v230, %v519
      %v521 = vpop.f32.mrf.mxu0
      %v522 = vadd.f32 %v234, %v521
      %v523 = vpop.f32.mrf.mxu0
      %v524 = vadd.f32 %v230, %v523
      %v525 = vpop.f32.mrf.mxu0
      %v526 = vadd.f32 %v234, %v525
      %527 = vmatprep.mubr.bf16.mxu0 0
      %528 = vmatmul.mubr.bf16.gmra.mxu0 %v283
      %v529 = vpop.f32.mrf.mxu0
      %v530 = vadd.f32 %v230, %v529
      %v531 = vpop.f32.mrf.mxu0
      %v532 = vadd.f32 %v234, %v531
      %v533 = vpop.f32.mrf.mxu0
      %v534 = vadd.f32 %v230, %v533
      %v535 = vpop.f32.mrf.mxu0
      %v536 = vadd.f32 %v234, %v535
      %537 = vmatprep.mubr.bf16.mxu0 0
      %538 = vmatmul.mubr.bf16.gmra.mxu0 %v284
      %v539 = vpop.f32.mrf.mxu0
      %v540 = vadd.f32 %v230, %v539
      %v541 = vpop.f32.mrf.mxu0
      %v542 = vadd.f32 %v234, %v541
      %v543 = vpop.f32.mrf.mxu0
      %v544 = vadd.f32 %v230, %v543
      %v545 = vpop.f32.mrf.mxu0
      %v546 = vadd.f32 %v234, %v545
      %547 = vmatprep.mubr.bf16.mxu0 0
      %548 = vmatmul.mubr.bf16.gmra.mxu0 %v285
      %v549 = vpop.f32.mrf.mxu0
      %v550 = vadd.f32 %v230, %v549
      %v551 = vpop.f32.mrf.mxu0
      %v552 = vadd.f32 %v234, %v551
      %v553 = vpop.f32.mrf.mxu0
      %v554 = vadd.f32 %v230, %v553
      %v555 = vpop.f32.mrf.mxu0
      %v556 = vadd.f32 %v234, %v555
      %557 = vmatprep.mubr.bf16.mxu0 0
      %558 = vmatmul.mubr.bf16.gmra.mxu0 %v286
      %v559 = vpop.f32.mrf.mxu0
      %v560 = vadd.f32 %v230, %v559
      %v561 = vpop.f32.mrf.mxu0
      %v562 = vadd.f32 %v234, %v561
      %v563 = vpop.f32.mrf.mxu0
      %v564 = vadd.f32 %v230, %v563
      %v565 = vpop.f32.mrf.mxu0
      %v566 = vadd.f32 %v234, %v565
      %567 = vdwg.mxu0
      %568 = vmatprep.subr.bf16.mxu0 %v422
      %569 = vmatpush1.bf16.msra.mxu0 %v421
      %570 = vmatprep.subr.bf16.mxu0 %v418
      %571 = vmatpush1.bf16.msra.mxu0 %v417
      %572 = vmatprep.subr.bf16.mxu0 %v414
      %573 = vmatpush1.bf16.msra.mxu0 %v413
      %574 = vmatprep.subr.bf16.mxu0 %v410
      %575 = vmatpush1.bf16.msra.mxu0 %v409
      %576 = vmatprep.subr.bf16.mxu0 %v406
      %577 = vmatpush1.bf16.msra.mxu0 %v405
      %578 = vmatprep.subr.bf16.mxu0 %v402
      %579 = vmatpush1.bf16.msra.mxu0 %v401
      %580 = vmatprep.subr.bf16.mxu0 %v398
      %581 = vmatpush1.bf16.msra.mxu0 %v397
      %582 = vmatprep.subr.bf16.mxu0 %v394
      %583 = vmatpush1.bf16.msra.mxu0 %v393
      %584 = vmatprep.subr.bf16.mxu0 0
      %585 = vmatpush2.bf16.msra.mxu0 0
      %586 = vmatprep.subr.bf16.mxu0 0
      %587 = vmatpush2.bf16.msra.mxu0 0
      %588 = vmatprep.subr.bf16.mxu0 0
      %589 = vmatpush2.bf16.msra.mxu0 0
      %590 = vmatprep.subr.bf16.mxu0 0
      %591 = vmatpush2.bf16.msra.mxu0 0
      %592 = vmatprep.subr.bf16.mxu0 0
      %593 = vmatpush2.bf16.msra.mxu0 0
      %594 = vmatprep.subr.bf16.mxu0 0
      %595 = vmatpush2.bf16.msra.mxu0 0
      %596 = vmatprep.subr.bf16.mxu0 0
      %597 = vmatpush2.bf16.msra.mxu0 0
      %598 = vmatprep.subr.bf16.mxu0 0
      %599 = vmatpush2.bf16.msra.mxu0 0
      %600 = vmatprep.mubr.bf16.mxu0 0
      %601 = vmatmul.mubr.bf16.gmra.mxu0 %v279
      %v602 = vpop.f32.mrf.mxu0
      %v603 = vadd.f32 %v238, %v602
      %v604 = vpop.f32.mrf.mxu0
      %v605 = vadd.f32 %v242, %v604
      %v606 = vpop.f32.mrf.mxu0
      %v607 = vadd.f32 %v238, %v606
      %v608 = vpop.f32.mrf.mxu0
      %v609 = vadd.f32 %v242, %v608
      %610 = vmatprep.mubr.bf16.mxu0 0
      %611 = vmatmul.mubr.bf16.gmra.mxu0 %v280
      %v612 = vpop.f32.mrf.mxu0
      %v613 = vadd.f32 %v238, %v612
      %v614 = vpop.f32.mrf.mxu0
      %v615 = vadd.f32 %v242, %v614
      %v616 = vpop.f32.mrf.mxu0
      %v617 = vadd.f32 %v238, %v616
      %v618 = vpop.f32.mrf.mxu0
      %v619 = vadd.f32 %v242, %v618
      %620 = vmatprep.mubr.bf16.mxu0 0
      %621 = vmatmul.mubr.bf16.gmra.mxu0 %v281
      %v622 = vpop.f32.mrf.mxu0
      %v623 = vadd.f32 %v238, %v622
      %v624 = vpop.f32.mrf.mxu0
      %v625 = vadd.f32 %v242, %v624
      %v626 = vpop.f32.mrf.mxu0
      %v627 = vadd.f32 %v238, %v626
      %v628 = vpop.f32.mrf.mxu0
      %v629 = vadd.f32 %v242, %v628
      %630 = vmatprep.mubr.bf16.mxu0 0
      %631 = vmatmul.mubr.bf16.gmra.mxu0 %v282
      %v632 = vpop.f32.mrf.mxu0
      %v633 = vadd.f32 %v238, %v632
      %v634 = vpop.f32.mrf.mxu0
      %v635 = vadd.f32 %v242, %v634
      %v636 = vpop.f32.mrf.mxu0
      %v637 = vadd.f32 %v238, %v636
      %v638 = vpop.f32.mrf.mxu0
      %v639 = vadd.f32 %v242, %v638
      %640 = vmatprep.mubr.bf16.mxu0 0
      %641 = vmatmul.mubr.bf16.gmra.mxu0 %v283
      %v642 = vpop.f32.mrf.mxu0
      %v643 = vadd.f32 %v238, %v642
      %v644 = vpop.f32.mrf.mxu0
      %v645 = vadd.f32 %v242, %v644
      %v646 = vpop.f32.mrf.mxu0
      %v647 = vadd.f32 %v238, %v646
      %v648 = vpop.f32.mrf.mxu0
      %v649 = vadd.f32 %v242, %v648
      %650 = vmatprep.mubr.bf16.mxu0 0
      %651 = vmatmul.mubr.bf16.gmra.mxu0 %v284
      %v652 = vpop.f32.mrf.mxu0
      %v653 = vadd.f32 %v238, %v652
      %v654 = vpop.f32.mrf.mxu0
      %v655 = vadd.f32 %v242, %v654
      %v656 = vpop.f32.mrf.mxu0
      %v657 = vadd.f32 %v238, %v656
      %v658 = vpop.f32.mrf.mxu0
      %v659 = vadd.f32 %v242, %v658
      %660 = vmatprep.mubr.bf16.mxu0 0
      %661 = vmatmul.mubr.bf16.gmra.mxu0 %v285
      %v662 = vpop.f32.mrf.mxu0
      %v663 = vadd.f32 %v238, %v662
      %v664 = vpop.f32.mrf.mxu0
      %v665 = vadd.f32 %v242, %v664
      %v666 = vpop.f32.mrf.mxu0
      %v667 = vadd.f32 %v238, %v666
      %v668 = vpop.f32.mrf.mxu0
      %v669 = vadd.f32 %v242, %v668
      %670 = vmatprep.mubr.bf16.mxu0 0
      %671 = vmatmul.mubr.bf16.gmra.mxu0 %v286
      %v672 = vpop.f32.mrf.mxu0
      %v673 = vadd.f32 %v238, %v672
      %v674 = vpop.f32.mrf.mxu0
      %v675 = vadd.f32 %v242, %v674
      %v676 = vpop.f32.mrf.mxu0
      %v677 = vadd.f32 %v238, %v676
      %v678 = vpop.f32.mrf.mxu0
      %v679 = vadd.f32 %v242, %v678
      %680 = vdwg.mxu0
      %vm681 = vcmp.ge.f32.partialorder %v490, 0.0
      %vm682 = vcmp.ge.f32.partialorder %v492, 0.0
      %vm683 = vcmp.ge.f32.partialorder %v603, 0.0
      %vm684 = vcmp.ge.f32.partialorder %v605, 0.0
      %vm685 = vcmp.ge.f32.partialorder %v494, 0.0
      %vm686 = vcmp.ge.f32.partialorder %v496, 0.0
      %vm687 = vcmp.ge.f32.partialorder %v607, 0.0
      %vm688 = vcmp.ge.f32.partialorder %v609, 0.0
      %vm689 = vcmp.ge.f32.partialorder %v500, 0.0
      %vm690 = vcmp.ge.f32.partialorder %v502, 0.0
      %vm691 = vcmp.ge.f32.partialorder %v613, 0.0
      %vm692 = vcmp.ge.f32.partialorder %v615, 0.0
      %vm693 = vcmp.ge.f32.partialorder %v504, 0.0
      %vm694 = vcmp.ge.f32.partialorder %v506, 0.0
      %vm695 = vcmp.ge.f32.partialorder %v617, 0.0
      %vm696 = vcmp.ge.f32.partialorder %v619, 0.0
      %vm697 = vcmp.ge.f32.partialorder %v510, 0.0
      %vm698 = vcmp.ge.f32.partialorder %v512, 0.0
      %vm699 = vcmp.ge.f32.partialorder %v623, 0.0
      %vm700 = vcmp.ge.f32.partialorder %v625, 0.0
      %vm701 = vcmp.ge.f32.partialorder %v514, 0.0
      %vm702 = vcmp.ge.f32.partialorder %v516, 0.0
      %vm703 = vcmp.ge.f32.partialorder %v627, 0.0
      %vm704 = vcmp.ge.f32.partialorder %v629, 0.0
      %vm705 = vcmp.ge.f32.partialorder %v520, 0.0
      %vm706 = vcmp.ge.f32.partialorder %v522, 0.0
      %vm707 = vcmp.ge.f32.partialorder %v633, 0.0
      %vm708 = vcmp.ge.f32.partialorder %v635, 0.0
      %vm709 = vcmp.ge.f32.partialorder %v524, 0.0
      %vm710 = vcmp.ge.f32.partialorder %v526, 0.0
      %vm711 = vcmp.ge.f32.partialorder %v637, 0.0
      %vm712 = vcmp.ge.f32.partialorder %v639, 0.0
      %vm713 = vcmp.ge.f32.partialorder %v530, 0.0
      %vm714 = vcmp.ge.f32.partialorder %v532, 0.0
      %vm715 = vcmp.ge.f32.partialorder %v643, 0.0
      %vm716 = vcmp.ge.f32.partialorder %v645, 0.0
      %vm717 = vcmp.ge.f32.partialorder %v534, 0.0
      %vm718 = vcmp.ge.f32.partialorder %v536, 0.0
      %vm719 = vcmp.ge.f32.partialorder %v647, 0.0
      %vm720 = vcmp.ge.f32.partialorder %v649, 0.0
      %vm721 = vcmp.ge.f32.partialorder %v540, 0.0
      %vm722 = vcmp.ge.f32.partialorder %v542, 0.0
      %vm723 = vcmp.ge.f32.partialorder %v653, 0.0
      %vm724 = vcmp.ge.f32.partialorder %v655, 0.0
      %vm725 = vcmp.ge.f32.partialorder %v544, 0.0
      %vm726 = vcmp.ge.f32.partialorder %v546, 0.0
      %vm727 = vcmp.ge.f32.partialorder %v657, 0.0
      %vm728 = vcmp.ge.f32.partialorder %v659, 0.0
      %vm729 = vcmp.ge.f32.partialorder %v550, 0.0
      %vm730 = vcmp.ge.f32.partialorder %v552, 0.0
      %vm731 = vcmp.ge.f32.partialorder %v663, 0.0
      %vm732 = vcmp.ge.f32.partialorder %v665, 0.0
      %vm733 = vcmp.ge.f32.partialorder %v554, 0.0
      %vm734 = vcmp.ge.f32.partialorder %v556, 0.0
      %vm735 = vcmp.ge.f32.partialorder %v667, 0.0
      %vm736 = vcmp.ge.f32.partialorder %v669, 0.0
      %vm737 = vcmp.ge.f32.partialorder %v560, 0.0
      %vm738 = vcmp.ge.f32.partialorder %v562, 0.0
      %vm739 = vcmp.ge.f32.partialorder %v673, 0.0
      %vm740 = vcmp.ge.f32.partialorder %v675, 0.0
      %vm741 = vcmp.ge.f32.partialorder %v564, 0.0
      %vm742 = vcmp.ge.f32.partialorder %v566, 0.0
      %vm743 = vcmp.ge.f32.partialorder %v677, 0.0
      %vm744 = vcmp.ge.f32.partialorder %v679, 0.0
      %v745 = vmul.f32 %v490, 0.01
      %v746 = vmul.f32 %v492, 0.01
      %v747 = vmul.f32 %v603, 0.01
      %v748 = vmul.f32 %v605, 0.01
      %v749 = vmul.f32 %v494, 0.01
      %v750 = vmul.f32 %v496, 0.01
      %v751 = vmul.f32 %v607, 0.01
      %v752 = vmul.f32 %v609, 0.01
      %v753 = vmul.f32 %v500, 0.01
      %v754 = vmul.f32 %v502, 0.01
      %v755 = vmul.f32 %v613, 0.01
      %v756 = vmul.f32 %v615, 0.01
      %v757 = vmul.f32 %v504, 0.01
      %v758 = vmul.f32 %v506, 0.01
      %v759 = vmul.f32 %v617, 0.01
      %v760 = vmul.f32 %v619, 0.01
      %v761 = vmul.f32 %v510, 0.01
      %v762 = vmul.f32 %v512, 0.01
      %v763 = vmul.f32 %v623, 0.01
      %v764 = vmul.f32 %v625, 0.01
      %v765 = vmul.f32 %v514, 0.01
      %v766 = vmul.f32 %v516, 0.01
      %v767 = vmul.f32 %v627, 0.01
      %v768 = vmul.f32 %v629, 0.01
      %v769 = vmul.f32 %v520, 0.01
      %v770 = vmul.f32 %v522, 0.01
      %v771 = vmul.f32 %v633, 0.01
      %v772 = vmul.f32 %v635, 0.01
      %v773 = vmul.f32 %v524, 0.01
      %v774 = vmul.f32 %v526, 0.01
      %v775 = vmul.f32 %v637, 0.01
      %v776 = vmul.f32 %v639, 0.01
      %v777 = vmul.f32 %v530, 0.01
      %v778 = vmul.f32 %v532, 0.01
      %v779 = vmul.f32 %v643, 0.01
      %v780 = vmul.f32 %v645, 0.01
      %v781 = vmul.f32 %v534, 0.01
      %v782 = vmul.f32 %v536, 0.01
      %v783 = vmul.f32 %v647, 0.01
      %v784 = vmul.f32 %v649, 0.01
      %v785 = vmul.f32 %v540, 0.01
      %v786 = vmul.f32 %v542, 0.01
      %v787 = vmul.f32 %v653, 0.01
      %v788 = vmul.f32 %v655, 0.01
      %v789 = vmul.f32 %v544, 0.01
      %v790 = vmul.f32 %v546, 0.01
      %v791 = vmul.f32 %v657, 0.01
      %v792 = vmul.f32 %v659, 0.01
      %v793 = vmul.f32 %v550, 0.01
      %v794 = vmul.f32 %v552, 0.01
      %v795 = vmul.f32 %v663, 0.01
      %v796 = vmul.f32 %v665, 0.01
      %v797 = vmul.f32 %v554, 0.01
      %v798 = vmul.f32 %v556, 0.01
      %v799 = vmul.f32 %v667, 0.01
      %v800 = vmul.f32 %v669, 0.01
      %v801 = vmul.f32 %v560, 0.01
      %v802 = vmul.f32 %v562, 0.01
      %v803 = vmul.f32 %v673, 0.01
      %v804 = vmul.f32 %v675, 0.01
      %v805 = vmul.f32 %v564, 0.01
      %v806 = vmul.f32 %v566, 0.01
      %v807 = vmul.f32 %v677, 0.01
      %v808 = vmul.f32 %v679, 0.01
      %v809 = vsel %vm681, %v490, %v745
      %v810 = vsel %vm682, %v492, %v746
      %v811 = vsel %vm683, %v603, %v747
      %v812 = vsel %vm684, %v605, %v748
      %v813 = vsel %vm685, %v494, %v749
      %v814 = vsel %vm686, %v496, %v750
      %v815 = vsel %vm687, %v607, %v751
      %v816 = vsel %vm688, %v609, %v752
      %v817 = vsel %vm689, %v500, %v753
      %v818 = vsel %vm690, %v502, %v754
      %v819 = vsel %vm691, %v613, %v755
      %v820 = vsel %vm692, %v615, %v756
      %v821 = vsel %vm693, %v504, %v757
      %v822 = vsel %vm694, %v506, %v758
      %v823 = vsel %vm695, %v617, %v759
      %v824 = vsel %vm696, %v619, %v760
      %v825 = vsel %vm697, %v510, %v761
      %v826 = vsel %vm698, %v512, %v762
      %v827 = vsel %vm699, %v623, %v763
      %v828 = vsel %vm700, %v625, %v764
      %v829 = vsel %vm701, %v514, %v765
      %v830 = vsel %vm702, %v516, %v766
      %v831 = vsel %vm703, %v627, %v767
      %v832 = vsel %vm704, %v629, %v768
      %v833 = vsel %vm705, %v520, %v769
      %v834 = vsel %vm706, %v522, %v770
      %v835 = vsel %vm707, %v633, %v771
      %v836 = vsel %vm708, %v635, %v772
      %v837 = vsel %vm709, %v524, %v773
      %v838 = vsel %vm710, %v526, %v774
      %v839 = vsel %vm711, %v637, %v775
      %v840 = vsel %vm712, %v639, %v776
      %v841 = vsel %vm713, %v530, %v777
      %v842 = vsel %vm714, %v532, %v778
      %v843 = vsel %vm715, %v643, %v779
      %v844 = vsel %vm716, %v645, %v780
      %v845 = vsel %vm717, %v534, %v781
      %v846 = vsel %vm718, %v536, %v782
      %v847 = vsel %vm719, %v647, %v783
      %v848 = vsel %vm720, %v649, %v784
      %v849 = vsel %vm721, %v540, %v785
      %v850 = vsel %vm722, %v542, %v786
      %v851 = vsel %vm723, %v653, %v787
      %v852 = vsel %vm724, %v655, %v788
      %v853 = vsel %vm725, %v544, %v789
      %v854 = vsel %vm726, %v546, %v790
      %v855 = vsel %vm727, %v657, %v791
      %v856 = vsel %vm728, %v659, %v792
      %v857 = vsel %vm729, %v550, %v793
      %v858 = vsel %vm730, %v552, %v794
      %v859 = vsel %vm731, %v663, %v795
      %v860 = vsel %vm732, %v665, %v796
      %v861 = vsel %vm733, %v554, %v797
      %v862 = vsel %vm734, %v556, %v798
      %v863 = vsel %vm735, %v667, %v799
      %v864 = vsel %vm736, %v669, %v800
      %v865 = vsel %vm737, %v560, %v801
      %v866 = vsel %vm738, %v562, %v802
      %v867 = vsel %vm739, %v673, %v803
      %v868 = vsel %vm740, %v675, %v804
      %v869 = vsel %vm741, %v564, %v805
      %v870 = vsel %vm742, %v566, %v806
      %v871 = vsel %vm743, %v677, %v807
      %v872 = vsel %vm744, %v679, %v808
      %873 = vst [vmem:[%s174] sm:$0xff] %v809
      %874 = vst [vmem:[%s174 + $0x8] sm:$0xff] %v810
      %875 = vst [vmem:[%s174 + $0x10] sm:$0xff] %v811
      %876 = vst [vmem:[%s174 + $0x18] sm:$0xff] %v812
      %877 = vst [vmem:[%s174 + $0x20] sm:$0xff] %v813
      %878 = vst [vmem:[%s174 + $0x28] sm:$0xff] %v814
      %879 = vst [vmem:[%s174 + $0x30] sm:$0xff] %v815
      %880 = vst [vmem:[%s174 + $0x38] sm:$0xff] %v816
      %881 = vst [vmem:[%s174 + $0x40] sm:$0xff] %v817
      %882 = vst [vmem:[%s174 + $0x48] sm:$0xff] %v818
      %883 = vst [vmem:[%s174 + $0x50] sm:$0xff] %v819
      %884 = vst [vmem:[%s174 + $0x58] sm:$0xff] %v820
      %885 = vst [vmem:[%s174 + $0x60] sm:$0xff] %v821
      %886 = vst [vmem:[%s174 + $0x68] sm:$0xff] %v822
      %887 = vst [vmem:[%s174 + $0x70] sm:$0xff] %v823
      %888 = vst [vmem:[%s174 + $0x78] sm:$0xff] %v824
      %889 = vst [vmem:[%s174 + $0x80] sm:$0xff] %v825
      %890 = vst [vmem:[%s174 + $0x88] sm:$0xff] %v826
      %891 = vst [vmem:[%s174 + $0x90] sm:$0xff] %v827
      %892 = vst [vmem:[%s174 + $0x98] sm:$0xff] %v828
      %893 = vst [vmem:[%s174 + $0xa0] sm:$0xff] %v829
      %894 = vst [vmem:[%s174 + $0xa8] sm:$0xff] %v830
      %895 = vst [vmem:[%s174 + $0xb0] sm:$0xff] %v831
      %896 = vst [vmem:[%s174 + $0xb8] sm:$0xff] %v832
      %897 = vst [vmem:[%s174 + $0xc0] sm:$0xff] %v833
      %898 = vst [vmem:[%s174 + $0xc8] sm:$0xff] %v834
      %899 = vst [vmem:[%s174 + $0xd0] sm:$0xff] %v835
      %900 = vst [vmem:[%s174 + $0xd8] sm:$0xff] %v836
      %901 = vst [vmem:[%s174 + $0xe0] sm:$0xff] %v837
      %902 = vst [vmem:[%s174 + $0xe8] sm:$0xff] %v838
      %903 = vst [vmem:[%s174 + $0xf0] sm:$0xff] %v839
      %904 = vst [vmem:[%s174 + $0xf8] sm:$0xff] %v840
      %905 = vst [vmem:[%s174 + $0x100] sm:$0xff] %v841
      %906 = vst [vmem:[%s174 + $0x108] sm:$0xff] %v842
      %907 = vst [vmem:[%s174 + $0x110] sm:$0xff] %v843
      %908 = vst [vmem:[%s174 + $0x118] sm:$0xff] %v844
      %909 = vst [vmem:[%s174 + $0x120] sm:$0xff] %v845
      %910 = vst [vmem:[%s174 + $0x128] sm:$0xff] %v846
      %911 = vst [vmem:[%s174 + $0x130] sm:$0xff] %v847
      %912 = vst [vmem:[%s174 + $0x138] sm:$0xff] %v848
      %913 = vst [vmem:[%s174 + $0x140] sm:$0xff] %v849
      %914 = vst [vmem:[%s174 + $0x148] sm:$0xff] %v850
      %915 = vst [vmem:[%s174 + $0x150] sm:$0xff] %v851
      %916 = vst [vmem:[%s174 + $0x158] sm:$0xff] %v852
      %917 = vst [vmem:[%s174 + $0x160] sm:$0xff] %v853
      %918 = vst [vmem:[%s174 + $0x168] sm:$0xff] %v854
      %919 = vst [vmem:[%s174 + $0x170] sm:$0xff] %v855
      %920 = vst [vmem:[%s174 + $0x178] sm:$0xff] %v856
      %921 = vst [vmem:[%s174 + $0x180] sm:$0xff] %v857
      %922 = vst [vmem:[%s174 + $0x188] sm:$0xff] %v858
      %923 = vst [vmem:[%s174 + $0x190] sm:$0xff] %v859
      %924 = vst [vmem:[%s174 + $0x198] sm:$0xff] %v860
      %925 = vst [vmem:[%s174 + $0x1a0] sm:$0xff] %v861
      %926 = vst [vmem:[%s174 + $0x1a8] sm:$0xff] %v862
      %927 = vst [vmem:[%s174 + $0x1b0] sm:$0xff] %v863
      %928 = vst [vmem:[%s174 + $0x1b8] sm:$0xff] %v864
      %929 = vst [vmem:[%s174 + $0x1c0] sm:$0xff] %v865
      %930 = vst [vmem:[%s174 + $0x1c8] sm:$0xff] %v866
      %931 = vst [vmem:[%s174 + $0x1d0] sm:$0xff] %v867
      %932 = vst [vmem:[%s174 + $0x1d8] sm:$0xff] %v868
      %933 = vst [vmem:[%s174 + $0x1e0] sm:$0xff] %v869
      %934 = vst [vmem:[%s174 + $0x1e8] sm:$0xff] %v870
      %935 = vst [vmem:[%s174 + $0x1f0] sm:$0xff] %v871
      %936 = vst [vmem:[%s174 + $0x1f8] sm:$0xff] %v872
      %s937 = smul.u32 16, %s14
      %p938 = scmp.lt.s32.totalorder %s937, 31
      %s939 = scalar_select %p938, %s937, 31
      %s940 = smul.addr %s939, 4
      %s941 = smul.addr %s940, 8
      %s942 = scalar_lea.vmem %s3, %s941
      // Predicated region
      $region33: #{pixel_shuffle_block.3} parent=31 // pred_check
        %p943 = pneg %p100
      $region34: #{pixel_shuffle_block.3} parent=31 // pred_check_branch
        %945 = sbr.rel (%p943) target = $region36
      $region35: #{pixel_shuffle_block.3} parent=31 // pred_region
        %s946 = smul.u32 16, %s14
      $region36: #{pixel_shuffle_block.3} parent=31 // pred_fallthru
        _
    $region32: #{pixel_shuffle_block.3} parent=5 // pred_fallthru
      _
    %p947 = scmp.le.s32.totalorder 2, %s9
    // Predicated region
    $region37: #{pixel_shuffle_block.3} parent=5 // pred_check
      %p948 = pneg %p947
    $region38: #{pixel_shuffle_block.3} parent=5 // pred_check_branch
      %950 = sbr.rel (%p948) target = $region40
    $region39: #{pixel_shuffle_block.3} parent=5 // pred_region
      %s951 = ssub.s32 %s9, 2
      // Predicated region
      $region41: #{pixel_shuffle_block.3} parent=39 // pred_check
        %p952 = pneg %p106
      $region42: #{pixel_shuffle_block.3} parent=39 // pred_check_branch
        %954 = sbr.rel (%p952) target = $region44
      $region43: #{pixel_shuffle_block.3} parent=39 // pred_region
        %s955 = smul.u32 16, %s15
        %p956 = scmp.lt.s32.totalorder %s955, 31
        %s957 = scalar_select %p956, %s955, 31
        %s958 = smul.addr %s957, 4
        %s959 = smul.addr %s958, 8
        %s960 = scalar_lea.vmem %s3, %s959
      $region44: #{pixel_shuffle_block.3} parent=39 // pred_fallthru
        _
    $region40: #{pixel_shuffle_block.3} parent=5 // pred_fallthru
      _
  $region6: #{pixel_shuffle_block.3} parent=0 // loop_footer
    %s13 = sadd.s32 1, %s9
  $region7: #{pixel_shuffle_block.3} parent=0 // loop_footer_branch
    %8 = sbr.rel target = $region3
  $region8: #{pixel_shuffle_block.3} parent=0 // loop_exit
    _

</llo_original>
